<compile_context>
chip_gen: v7x
topology: tpu7x:2x2x1
jax: 0.10.0
libtpu: 0.0.40
codegen_flags: <defaults>
</compile_context>

<pallas_src>
import numpy as np
import jax
import jax.numpy as jnp
from jax import lax
from jax.experimental import pallas as pl
from jax.experimental.pallas import tpu as pltpu

LN_EPS = 1e-5  # torch.nn.LayerNorm default


# ----------------------------- Pallas kernel ------------------------------ #
def adapter_kernel(x_ref, res_ref, gamma_ref, beta_ref, w1_ref, w2_ref, w3_ref,
                   psum_ref, sew1_ref, sew2_ref, out_ref):
    L = x_ref.shape[1]
    C = x_ref.shape[2]          # d_in == expanded lane width

    x = x_ref[0]                # (L, C)
    res = res_ref[0]            # (L, C)

    row = lax.broadcasted_iota(jnp.int32, (L, C), 0)

    def shift_rows(v, s):
        # result[l] = v[l - s], zero-filled at the edges ('same' conv halo).
        # XLU sublane rotate + VPU edge mask; no padded scratch, no unaligned
        # sublane slices.
        r = pltpu.roll(v, s % L, axis=0)
        if s > 0:
            return jnp.where(row >= s, r, 0.0)
        return jnp.where(row < L + s, r, 0.0)

    # --- LayerNorm over channels (last dim) ---
    mean = jnp.mean(x, axis=-1, keepdims=True)
    xc = x - mean
    var = jnp.mean(xc * xc, axis=-1, keepdims=True)
    xn = xc * lax.rsqrt(var + LN_EPS) * gamma_ref[...] + beta_ref[...]

    # --- conv1: Conv1d(d_in, d_out, k=3, groups=d_out, 'same') ---
    # per-lane weighted taps on the natural channel layout ...
    u = (shift_rows(xn, 1) * w1_ref[0:1, :]
         + xn * w1_ref[1:2, :]
         + shift_rows(xn, -1) * w1_ref[2:3, :])
    # ... then one exact matmul with a 0/1 group-sum matrix reduces each
    # cpg-wide input group and broadcasts the result back to the expanded
    # lanes (lane c of h carries bottleneck channel c // cpg).
    h = jnp.dot(u, psum_ref[...], preferred_element_type=jnp.float32,
                precision=lax.Precision.HIGHEST)
    h = jnp.maximum(h, 0.0)                              # ReLU

    # --- conv2: depthwise Conv1d(d_out, d_out, k=5, 'same') (expanded lanes) ---
    h2 = (shift_rows(h, 2) * w2_ref[0:1, :]
          + shift_rows(h, 1) * w2_ref[1:2, :]
          + h * w2_ref[2:3, :]
          + shift_rows(h, -1) * w2_ref[3:4, :]
          + shift_rows(h, -2) * w2_ref[4:5, :])

    # --- conv3: Conv1d(d_out, d_in, k=3, groups=d_out, 'same') = pure fan-out,
    #     elementwise on the expanded lanes ---
    y = (shift_rows(h2, 1) * w3_ref[0:1, :]
         + h2 * w3_ref[1:2, :]
         + shift_rows(h2, -1) * w3_ref[2:3, :])

    # --- SE gate: mean-pool over L, C -> C/16 -> C MLP, sigmoid, scale ---
    # Kept off the MXU: broadcast-mul + cross-lane / cross-sublane reductions.
    pooled = jnp.mean(y, axis=0, keepdims=True)                         # (1, C)
    z = jnp.maximum(
        jnp.sum(pooled * sew1_ref[...], axis=-1, keepdims=True), 0.0)   # (d_hid, 1)
    gate = jax.nn.sigmoid(
        jnp.sum(z * sew2_ref[...], axis=0, keepdims=True))              # (1, C)

    out_ref[0] = res + y * gate


# ------------------------------ JAX wrapper -------------------------------- #
def adapter_block(x, residual, packed):
    B, L, d_in = x.shape
    d_hid = packed["se_w1"].shape[0]

    kernel = pl.pallas_call(
        adapter_kernel,
        out_shape=jax.ShapeDtypeStruct((B, L, d_in), x.dtype),
        grid=(B,),
        in_specs=[
            pl.BlockSpec((1, L, d_in), lambda b: (b, 0, 0)),      # x
            pl.BlockSpec((1, L, d_in), lambda b: (b, 0, 0)),      # residual
            pl.BlockSpec((1, d_in), lambda b: (0, 0)),            # ln gamma
            pl.BlockSpec((1, d_in), lambda b: (0, 0)),            # ln beta
            pl.BlockSpec((3, d_in), lambda b: (0, 0)),            # conv1 taps (lane-expanded)
            pl.BlockSpec((5, d_in), lambda b: (0, 0)),            # conv2 dw   (lane-expanded)
            pl.BlockSpec((3, d_in), lambda b: (0, 0)),            # conv3 taps (lane-expanded)
            pl.BlockSpec((d_in, d_in), lambda b: (0, 0)),         # group-sum 0/1 matrix
            pl.BlockSpec((d_hid, d_in), lambda b: (0, 0)),        # se fc1
            pl.BlockSpec((d_hid, d_in), lambda b: (0, 0)),        # se fc2^T
        ],
        out_specs=pl.BlockSpec((1, L, d_in), lambda b: (b, 0, 0)),
        input_output_aliases={1: 0},   # reuse the residual buffer for the output
        compiler_params=pltpu.CompilerParams(
            dimension_semantics=("parallel",)),
    )
    return kernel(x, residual, packed["gamma"], packed["beta"],
                  packed["w1_lanes"], packed["w2_lanes"], packed["w3_lanes"],
                  packed["psum"], packed["se_w1"], packed["se_w2t"])


# --------------------- deterministic parameter setup ----------------------- #
def init_params(key, d_in, d_out, reduction=16):
    cpg = d_in // d_out            # input channels per group (conv1)
    d_hid = d_in // reduction
    ks = jax.random.split(key, 7)
    return dict(
        gamma=1.0 + 0.1 * jax.random.normal(ks[0], (d_in,), jnp.float32),
        beta=0.1 * jax.random.normal(ks[1], (d_in,), jnp.float32),
        w1=0.3 * jax.random.normal(ks[2], (d_out, cpg, 3), jnp.float32),
        w2=0.3 * jax.random.normal(ks[3], (d_out, 1, 5), jnp.float32),
        w3=0.3 * jax.random.normal(ks[4], (d_in, 1, 3), jnp.float32),
        se_w1=0.3 * jax.random.normal(ks[5], (d_hid, d_in), jnp.float32),
        se_w2=0.3 * jax.random.normal(ks[6], (d_in, d_hid), jnp.float32),
    )


def pack_for_kernel(p, d_in, d_out):
    """Pack weights for the lane-expanded formulation (no densified matmuls)."""
    cpg = d_in // d_out            # == d_in / d_out for conv1 groups and conv3 fan-out
    w1 = np.asarray(p["w1"])                        # (d_out, cpg, 3)
    w2 = np.asarray(p["w2"])[:, 0, :]               # (d_out, 5)
    w3 = np.asarray(p["w3"])[:, 0, :]               # (d_in, 3)

    # conv1: per-tap lane weights; lane c = o*cpg + j  ->  w1[o, j, k]
    w1_lanes = np.transpose(w1, (2, 0, 1)).reshape(3, d_in)
    # conv2: depthwise weights duplicated onto the expanded lanes (lane c -> c // cpg)
    w2_lanes = np.repeat(np.ascontiguousarray(w2.T), cpg, axis=1)       # (5, d_in)
    # conv3: fan-out weights; output channel i reads bottleneck channel i // cpg
    w3_lanes = np.ascontiguousarray(w3.T)                               # (3, d_in)
    # 0/1 group-sum-and-broadcast matrix for conv1 (block diag of cpg x cpg ones)
    psum = np.kron(np.eye(d_out, dtype=np.float32),
                   np.ones((cpg, cpg), np.float32))                     # (d_in, d_in)

    return dict(
        gamma=jnp.asarray(np.asarray(p["gamma"])[None, :]),
        beta=jnp.asarray(np.asarray(p["beta"])[None, :]),
        w1_lanes=jnp.asarray(w1_lanes, jnp.float32),
        w2_lanes=jnp.asarray(w2_lanes, jnp.float32),
        w3_lanes=jnp.asarray(w3_lanes, jnp.float32),
        psum=jnp.asarray(psum, jnp.float32),
        se_w1=jnp.asarray(np.asarray(p["se_w1"], np.float32)),          # (d_hid, d_in)
        se_w2t=jnp.asarray(np.asarray(p["se_w2"], np.float32).T),       # (d_hid, d_in)
    )


# --------------------------- pure-JAX reference ----------------------------- #
def reference(x, residual, p, d_out):
    hi = lax.Precision.HIGHEST
    mean = jnp.mean(x, -1, keepdims=True)
    var = jnp.mean((x - mean) ** 2, -1, keepdims=True)
    xn = (x - mean) / jnp.sqrt(var + LN_EPS) * p["gamma"] + p["beta"]
    h = jnp.transpose(xn, (0, 2, 1))                       # (B, C, L) like torch
    dn = ("NCH", "OIH", "NCH")
    h = lax.conv_general_dilated(h, p["w1"], (1,), "SAME", dimension_numbers=dn,
                                 feature_group_count=d_out, precision=hi)
    h = jnp.maximum(h, 0.0)
    h = lax.conv_general_dilated(h, p["w2"], (1,), "SAME", dimension_numbers=dn,
                                 feature_group_count=d_out, precision=hi)
    h = lax.conv_general_dilated(h, p["w3"], (1,), "SAME", dimension_numbers=dn,
                                 feature_group_count=d_out, precision=hi)
    pooled = jnp.mean(h, axis=-1)                          # (B, C)
    z = jnp.maximum(jnp.dot(pooled, p["se_w1"].T, precision=hi), 0.0)
    s = jax.nn.sigmoid(jnp.dot(z, p["se_w2"].T, precision=hi))
    h = h * s[:, :, None]
    return residual + jnp.transpose(h, (0, 2, 1))


# ----------------------------------- main ----------------------------------- #
if __name__ == "__main__":
    B, L, d_in, d_out = 2, 16, 64, 32     # in_dim % out_dim == 0, in_dim >= 16

    key = jax.random.PRNGKey(0)
    kx, kr, kp = jax.random.split(key, 3)
    x = jax.random.normal(kx, (B, L, d_in), jnp.float32)
    residual_input = jax.random.normal(kr, (B, L, d_in), jnp.float32)

    raw_params = init_params(kp, d_in, d_out)
    packed = pack_for_kernel(raw_params, d_in, d_out)

    # Reference computed first: the kernel aliases (may donate) the residual buffer.
    ref = jax.block_until_ready(reference(x, residual_input, raw_params, d_out))

    out = jax.block_until_ready(adapter_block(x, residual_input, packed))
    assert out.shape == (B, L, d_in)

    max_err = float(jnp.max(jnp.abs(out - ref)))
    assert max_err < 2e-3, f"mismatch vs reference: max abs err = {max_err}"

    print("KERNEL_OK")
</pallas_src>

<mosaic_0001>
module attributes {stable_mosaic.version = 11 : i64} {
  func.func @adapter_kernel(%arg0: i32, %arg1: memref<1x16x64xf32, #tpu.memory_space<vmem>>, %arg2: memref<1x16x64xf32, #tpu.memory_space<vmem>>, %arg3: memref<1x64xf32, #tpu.memory_space<vmem>>, %arg4: memref<1x64xf32, #tpu.memory_space<vmem>>, %arg5: memref<3x64xf32, #tpu.memory_space<vmem>>, %arg6: memref<5x64xf32, #tpu.memory_space<vmem>>, %arg7: memref<3x64xf32, #tpu.memory_space<vmem>>, %arg8: memref<64x64xf32, #tpu.memory_space<vmem>>, %arg9: memref<4x64xf32, #tpu.memory_space<vmem>>, %arg10: memref<4x64xf32, #tpu.memory_space<vmem>>, %arg11: memref<1x16x64xf32, #tpu.memory_space<vmem>>) attributes {dimension_semantics = [#tpu.dimension_semantics<parallel>], iteration_bounds = array<i64: 2>, scalar_prefetch = 0 : i64, scratch_operands = 0 : i64, tpu.core_type = #tpu.core_type<tc>, window_params = [{transform_indices = @transform_0, window_bounds = array<i64: 1, 16, 64>}, {transform_indices = @transform_1, window_bounds = array<i64: 1, 16, 64>}, {pipeline_mode = #tpu.pipeline_mode<synchronous>, transform_indices = @transform_2, window_bounds = array<i64: 1, 64>}, {pipeline_mode = #tpu.pipeline_mode<synchronous>, transform_indices = @transform_3, window_bounds = array<i64: 1, 64>}, {pipeline_mode = #tpu.pipeline_mode<synchronous>, transform_indices = @transform_4, window_bounds = array<i64: 3, 64>}, {pipeline_mode = #tpu.pipeline_mode<synchronous>, transform_indices = @transform_5, window_bounds = array<i64: 5, 64>}, {pipeline_mode = #tpu.pipeline_mode<synchronous>, transform_indices = @transform_6, window_bounds = array<i64: 3, 64>}, {pipeline_mode = #tpu.pipeline_mode<synchronous>, transform_indices = @transform_7, window_bounds = array<i64: 64, 64>}, {pipeline_mode = #tpu.pipeline_mode<synchronous>, transform_indices = @transform_8, window_bounds = array<i64: 4, 64>}, {pipeline_mode = #tpu.pipeline_mode<synchronous>, transform_indices = @transform_9, window_bounds = array<i64: 4, 64>}, {transform_indices = @transform_10, window_bounds = array<i64: 1, 16, 64>}]} {
    %c0 = arith.constant 0 : index
    %c0_0 = arith.constant 0 : index
    %c0_1 = arith.constant 0 : index
    %0 = vector.load %arg1[%c0, %c0_0, %c0_1] : memref<1x16x64xf32, #tpu.memory_space<vmem>>, vector<1x16x64xf32>
    %1 = vector.shape_cast %0 : vector<1x16x64xf32> to vector<16x64xf32>
    %c0_2 = arith.constant 0 : index
    %c0_3 = arith.constant 0 : index
    %c0_4 = arith.constant 0 : index
    %2 = vector.load %arg2[%c0_2, %c0_3, %c0_4] : memref<1x16x64xf32, #tpu.memory_space<vmem>>, vector<1x16x64xf32>
    %3 = vector.shape_cast %2 : vector<1x16x64xf32> to vector<16x64xf32>
    %4 = tpu.iota {dimensions = array<i32: 0>} : vector<16x64xi32>
    %cst = arith.constant dense<0.000000e+00> : vector<16xf32>
    %5 = vector.multi_reduction <add>, %1, %cst [1] : vector<16x64xf32> to vector<16xf32>
    %6 = vector.shape_cast %5 : vector<16xf32> to vector<16x1xf32>
    %cst_5 = arith.constant 6.400000e+01 : f32
    %7 = vector.broadcast %cst_5 : f32 to vector<16x1xf32>
    %8 = arith.divf %6, %7 : vector<16x1xf32>
    %9 = vector.broadcast %8 : vector<16x1xf32> to vector<16x64xf32>
    %10 = arith.subf %1, %9 : vector<16x64xf32>
    %11 = arith.mulf %10, %10 : vector<16x64xf32>
    %cst_6 = arith.constant dense<0.000000e+00> : vector<16xf32>
    %12 = vector.multi_reduction <add>, %11, %cst_6 [1] : vector<16x64xf32> to vector<16xf32>
    %13 = vector.shape_cast %12 : vector<16xf32> to vector<16x1xf32>
    %cst_7 = arith.constant 6.400000e+01 : f32
    %14 = vector.broadcast %cst_7 : f32 to vector<16x1xf32>
    %15 = arith.divf %13, %14 : vector<16x1xf32>
    %cst_8 = arith.constant 9.99999974E-6 : f32
    %16 = vector.broadcast %cst_8 : f32 to vector<16x1xf32>
    %17 = arith.addf %15, %16 : vector<16x1xf32>
    %18 = math.rsqrt %17 : vector<16x1xf32>
    %19 = vector.broadcast %18 : vector<16x1xf32> to vector<16x64xf32>
    %20 = arith.mulf %10, %19 : vector<16x64xf32>
    %c0_9 = arith.constant 0 : index
    %c0_10 = arith.constant 0 : index
    %21 = vector.load %arg3[%c0_9, %c0_10] : memref<1x64xf32, #tpu.memory_space<vmem>>, vector<1x64xf32>
    %22 = vector.broadcast %21 : vector<1x64xf32> to vector<16x64xf32>
    %23 = arith.mulf %20, %22 : vector<16x64xf32>
    %c0_11 = arith.constant 0 : index
    %c0_12 = arith.constant 0 : index
    %24 = vector.load %arg4[%c0_11, %c0_12] : memref<1x64xf32, #tpu.memory_space<vmem>>, vector<1x64xf32>
    %25 = vector.broadcast %24 : vector<1x64xf32> to vector<16x64xf32>
    %26 = arith.addf %23, %25 : vector<16x64xf32>
    %c1_i32 = arith.constant 1 : i32
    %27 = tpu.dynamic_rotate %26 by %c1_i32 dim 0 : vector<16x64xf32>, i32 -> vector<16x64xf32>
    %c1_i32_13 = arith.constant 1 : i32
    %28 = vector.broadcast %c1_i32_13 : i32 to vector<16x64xi32>
    %29 = arith.cmpi sge, %4, %28 : vector<16x64xi32>
    %cst_14 = arith.constant 0.000000e+00 : f32
    %30 = vector.broadcast %cst_14 : f32 to vector<16x64xf32>
    %31 = arith.select %29, %27, %30 : vector<16x64xi1>, vector<16x64xf32>
    %c0_15 = arith.constant 0 : index
    %c0_16 = arith.constant 0 : index
    %32 = vector.load %arg5[%c0_15, %c0_16] : memref<3x64xf32, #tpu.memory_space<vmem>>, vector<1x64xf32>
    %33 = vector.broadcast %32 : vector<1x64xf32> to vector<16x64xf32>
    %34 = arith.mulf %31, %33 : vector<16x64xf32>
    %c1 = arith.constant 1 : index
    %c0_17 = arith.constant 0 : index
    %35 = vector.load %arg5[%c1, %c0_17] : memref<3x64xf32, #tpu.memory_space<vmem>>, vector<1x64xf32>
    %36 = vector.broadcast %35 : vector<1x64xf32> to vector<16x64xf32>
    %37 = arith.mulf %26, %36 : vector<16x64xf32>
    %38 = arith.addf %34, %37 : vector<16x64xf32>
    %c15_i32 = arith.constant 15 : i32
    %39 = tpu.dynamic_rotate %26 by %c15_i32 dim 0 : vector<16x64xf32>, i32 -> vector<16x64xf32>
    %c15_i32_18 = arith.constant 15 : i32
    %40 = vector.broadcast %c15_i32_18 : i32 to vector<16x64xi32>
    %41 = arith.cmpi slt, %4, %40 : vector<16x64xi32>
    %cst_19 = arith.constant 0.000000e+00 : f32
    %42 = vector.broadcast %cst_19 : f32 to vector<16x64xf32>
    %43 = arith.select %41, %39, %42 : vector<16x64xi1>, vector<16x64xf32>
    %c2 = arith.constant 2 : index
    %c0_20 = arith.constant 0 : index
    %44 = vector.load %arg5[%c2, %c0_20] : memref<3x64xf32, #tpu.memory_space<vmem>>, vector<1x64xf32>
    %45 = vector.broadcast %44 : vector<1x64xf32> to vector<16x64xf32>
    %46 = arith.mulf %43, %45 : vector<16x64xf32>
    %47 = arith.addf %38, %46 : vector<16x64xf32>
    %c0_21 = arith.constant 0 : index
    %c0_22 = arith.constant 0 : index
    %48 = vector.load %arg8[%c0_21, %c0_22] : memref<64x64xf32, #tpu.memory_space<vmem>>, vector<64x64xf32>
    %cst_23 = arith.constant dense<0.000000e+00> : vector<16x64xf32>
    %49 = tpu.matmul %47, %48, %cst_23 {dimension_numbers = #tpu.dot_dimension_numbers<[1], [0], [0], [1], [0, 0, 1, 1], [], []>, precision = #tpu.contract_precision<fp32>} : vector<16x64xf32>, vector<64x64xf32>, vector<16x64xf32> -> vector<16x64xf32>
    %cst_24 = arith.constant 0.000000e+00 : f32
    %50 = vector.broadcast %cst_24 : f32 to vector<16x64xf32>
    %51 = arith.maximumf %49, %50 : vector<16x64xf32>
    %c2_i32 = arith.constant 2 : i32
    %52 = tpu.dynamic_rotate %51 by %c2_i32 dim 0 : vector<16x64xf32>, i32 -> vector<16x64xf32>
    %c2_i32_25 = arith.constant 2 : i32
    %53 = vector.broadcast %c2_i32_25 : i32 to vector<16x64xi32>
    %54 = arith.cmpi sge, %4, %53 : vector<16x64xi32>
    %cst_26 = arith.constant 0.000000e+00 : f32
    %55 = vector.broadcast %cst_26 : f32 to vector<16x64xf32>
    %56 = arith.select %54, %52, %55 : vector<16x64xi1>, vector<16x64xf32>
    %c0_27 = arith.constant 0 : index
    %c0_28 = arith.constant 0 : index
    %57 = vector.load %arg6[%c0_27, %c0_28] : memref<5x64xf32, #tpu.memory_space<vmem>>, vector<1x64xf32>
    %58 = vector.broadcast %57 : vector<1x64xf32> to vector<16x64xf32>
    %59 = arith.mulf %56, %58 : vector<16x64xf32>
    %c1_i32_29 = arith.constant 1 : i32
    %60 = tpu.dynamic_rotate %51 by %c1_i32_29 dim 0 : vector<16x64xf32>, i32 -> vector<16x64xf32>
    %c1_i32_30 = arith.constant 1 : i32
    %61 = vector.broadcast %c1_i32_30 : i32 to vector<16x64xi32>
    %62 = arith.cmpi sge, %4, %61 : vector<16x64xi32>
    %cst_31 = arith.constant 0.000000e+00 : f32
    %63 = vector.broadcast %cst_31 : f32 to vector<16x64xf32>
    %64 = arith.select %62, %60, %63 : vector<16x64xi1>, vector<16x64xf32>
    %c1_32 = arith.constant 1 : index
    %c0_33 = arith.constant 0 : index
    %65 = vector.load %arg6[%c1_32, %c0_33] : memref<5x64xf32, #tpu.memory_space<vmem>>, vector<1x64xf32>
    %66 = vector.broadcast %65 : vector<1x64xf32> to vector<16x64xf32>
    %67 = arith.mulf %64, %66 : vector<16x64xf32>
    %68 = arith.addf %59, %67 : vector<16x64xf32>
    %c2_34 = arith.constant 2 : index
    %c0_35 = arith.constant 0 : index
    %69 = vector.load %arg6[%c2_34, %c0_35] : memref<5x64xf32, #tpu.memory_space<vmem>>, vector<1x64xf32>
    %70 = vector.broadcast %69 : vector<1x64xf32> to vector<16x64xf32>
    %71 = arith.mulf %51, %70 : vector<16x64xf32>
    %72 = arith.addf %68, %71 : vector<16x64xf32>
    %c15_i32_36 = arith.constant 15 : i32
    %73 = tpu.dynamic_rotate %51 by %c15_i32_36 dim 0 : vector<16x64xf32>, i32 -> vector<16x64xf32>
    %c15_i32_37 = arith.constant 15 : i32
    %74 = vector.broadcast %c15_i32_37 : i32 to vector<16x64xi32>
    %75 = arith.cmpi slt, %4, %74 : vector<16x64xi32>
    %cst_38 = arith.constant 0.000000e+00 : f32
    %76 = vector.broadcast %cst_38 : f32 to vector<16x64xf32>
    %77 = arith.select %75, %73, %76 : vector<16x64xi1>, vector<16x64xf32>
    %c3 = arith.constant 3 : index
    %c0_39 = arith.constant 0 : index
    %78 = vector.load %arg6[%c3, %c0_39] : memref<5x64xf32, #tpu.memory_space<vmem>>, vector<1x64xf32>
    %79 = vector.broadcast %78 : vector<1x64xf32> to vector<16x64xf32>
    %80 = arith.mulf %77, %79 : vector<16x64xf32>
    %81 = arith.addf %72, %80 : vector<16x64xf32>
    %c14_i32 = arith.constant 14 : i32
    %82 = tpu.dynamic_rotate %51 by %c14_i32 dim 0 : vector<16x64xf32>, i32 -> vector<16x64xf32>
    %c14_i32_40 = arith.constant 14 : i32
    %83 = vector.broadcast %c14_i32_40 : i32 to vector<16x64xi32>
    %84 = arith.cmpi slt, %4, %83 : vector<16x64xi32>
    %cst_41 = arith.constant 0.000000e+00 : f32
    %85 = vector.broadcast %cst_41 : f32 to vector<16x64xf32>
    %86 = arith.select %84, %82, %85 : vector<16x64xi1>, vector<16x64xf32>
    %c4 = arith.constant 4 : index
    %c0_42 = arith.constant 0 : index
    %87 = vector.load %arg6[%c4, %c0_42] : memref<5x64xf32, #tpu.memory_space<vmem>>, vector<1x64xf32>
    %88 = vector.broadcast %87 : vector<1x64xf32> to vector<16x64xf32>
    %89 = arith.mulf %86, %88 : vector<16x64xf32>
    %90 = arith.addf %81, %89 : vector<16x64xf32>
    %c1_i32_43 = arith.constant 1 : i32
    %91 = tpu.dynamic_rotate %90 by %c1_i32_43 dim 0 : vector<16x64xf32>, i32 -> vector<16x64xf32>
    %c1_i32_44 = arith.constant 1 : i32
    %92 = vector.broadcast %c1_i32_44 : i32 to vector<16x64xi32>
    %93 = arith.cmpi sge, %4, %92 : vector<16x64xi32>
    %cst_45 = arith.constant 0.000000e+00 : f32
    %94 = vector.broadcast %cst_45 : f32 to vector<16x64xf32>
    %95 = arith.select %93, %91, %94 : vector<16x64xi1>, vector<16x64xf32>
    %c0_46 = arith.constant 0 : index
    %c0_47 = arith.constant 0 : index
    %96 = vector.load %arg7[%c0_46, %c0_47] : memref<3x64xf32, #tpu.memory_space<vmem>>, vector<1x64xf32>
    %97 = vector.broadcast %96 : vector<1x64xf32> to vector<16x64xf32>
    %98 = arith.mulf %95, %97 : vector<16x64xf32>
    %c1_48 = arith.constant 1 : index
    %c0_49 = arith.constant 0 : index
    %99 = vector.load %arg7[%c1_48, %c0_49] : memref<3x64xf32, #tpu.memory_space<vmem>>, vector<1x64xf32>
    %100 = vector.broadcast %99 : vector<1x64xf32> to vector<16x64xf32>
    %101 = arith.mulf %90, %100 : vector<16x64xf32>
    %102 = arith.addf %98, %101 : vector<16x64xf32>
    %c15_i32_50 = arith.constant 15 : i32
    %103 = tpu.dynamic_rotate %90 by %c15_i32_50 dim 0 : vector<16x64xf32>, i32 -> vector<16x64xf32>
    %c15_i32_51 = arith.constant 15 : i32
    %104 = vector.broadcast %c15_i32_51 : i32 to vector<16x64xi32>
    %105 = arith.cmpi slt, %4, %104 : vector<16x64xi32>
    %cst_52 = arith.constant 0.000000e+00 : f32
    %106 = vector.broadcast %cst_52 : f32 to vector<16x64xf32>
    %107 = arith.select %105, %103, %106 : vector<16x64xi1>, vector<16x64xf32>
    %c2_53 = arith.constant 2 : index
    %c0_54 = arith.constant 0 : index
    %108 = vector.load %arg7[%c2_53, %c0_54] : memref<3x64xf32, #tpu.memory_space<vmem>>, vector<1x64xf32>
    %109 = vector.broadcast %108 : vector<1x64xf32> to vector<16x64xf32>
    %110 = arith.mulf %107, %109 : vector<16x64xf32>
    %111 = arith.addf %102, %110 : vector<16x64xf32>
    %cst_55 = arith.constant dense<0.000000e+00> : vector<64xf32>
    %112 = vector.multi_reduction <add>, %111, %cst_55 [0] : vector<16x64xf32> to vector<64xf32>
    %113 = vector.shape_cast %112 : vector<64xf32> to vector<1x64xf32>
    %cst_56 = arith.constant 1.600000e+01 : f32
    %114 = vector.broadcast %cst_56 : f32 to vector<1x64xf32>
    %115 = arith.divf %113, %114 : vector<1x64xf32>
    %c0_57 = arith.constant 0 : index
    %c0_58 = arith.constant 0 : index
    %116 = vector.load %arg9[%c0_57, %c0_58] : memref<4x64xf32, #tpu.memory_space<vmem>>, vector<4x64xf32>
    %117 = vector.broadcast %115 : vector<1x64xf32> to vector<4x64xf32>
    %118 = arith.mulf %117, %116 : vector<4x64xf32>
    %cst_59 = arith.constant dense<0.000000e+00> : vector<4xf32>
    %119 = vector.multi_reduction <add>, %118, %cst_59 [1] : vector<4x64xf32> to vector<4xf32>
    %120 = vector.shape_cast %119 : vector<4xf32> to vector<4x1xf32>
    %cst_60 = arith.constant 0.000000e+00 : f32
    %121 = vector.broadcast %cst_60 : f32 to vector<4x1xf32>
    %122 = arith.maximumf %120, %121 : vector<4x1xf32>
    %c0_61 = arith.constant 0 : index
    %c0_62 = arith.constant 0 : index
    %123 = vector.load %arg10[%c0_61, %c0_62] : memref<4x64xf32, #tpu.memory_space<vmem>>, vector<4x64xf32>
    %124 = vector.broadcast %122 : vector<4x1xf32> to vector<4x64xf32>
    %125 = arith.mulf %124, %123 : vector<4x64xf32>
    %cst_63 = arith.constant dense<0.000000e+00> : vector<64xf32>
    %126 = vector.multi_reduction <add>, %125, %cst_63 [0] : vector<4x64xf32> to vector<64xf32>
    %127 = vector.shape_cast %126 : vector<64xf32> to vector<1x64xf32>
    %128 = arith.negf %127 : vector<1x64xf32>
    %129 = math.exp %128 : vector<1x64xf32>
    %cst_64 = arith.constant 1.000000e+00 : f32
    %130 = vector.broadcast %cst_64 : f32 to vector<1x64xf32>
    %131 = arith.addf %130, %129 : vector<1x64xf32>
    %132 = arith.divf %130, %131 : vector<1x64xf32>
    %133 = vector.broadcast %132 : vector<1x64xf32> to vector<16x64xf32>
    %134 = arith.mulf %111, %133 : vector<16x64xf32>
    %135 = arith.addf %3, %134 : vector<16x64xf32>
    %c0_65 = arith.constant 0 : index
    %c0_66 = arith.constant 0 : index
    %c0_67 = arith.constant 0 : index
    %136 = vector.load %arg11[%c0_65, %c0_66, %c0_67] : memref<1x16x64xf32, #tpu.memory_space<vmem>>, vector<1x16x64xf32>
    %137 = vector.shape_cast %136 : vector<1x16x64xf32> to vector<16x64xf32>
    %138 = vector.shape_cast %135 : vector<16x64xf32> to vector<1x16x64xf32>
    tpu.vector_store %arg11[%c0_65, %c0_66, %c0_67], %138 {strides = array<i32>} : memref<1x16x64xf32, #tpu.memory_space<vmem>>, vector<1x16x64xf32>,
    return
  }
  func.func @transform_0(%arg0: i32) -> (i32, i32, i32) {
    %c0_i32 = arith.constant 0 : i32
    %c0_i32_0 = arith.constant 0 : i32
    %c0_i32_1 = arith.constant 0 : i32
    return %arg0, %c0_i32, %c0_i32_0 : i32, i32, i32
  }
  func.func @transform_1(%arg0: i32) -> (i32, i32, i32) {
    %c0_i32 = arith.constant 0 : i32
    %c0_i32_0 = arith.constant 0 : i32
    %c0_i32_1 = arith.constant 0 : i32
    return %arg0, %c0_i32, %c0_i32_0 : i32, i32, i32
  }
  func.func @transform_2(%arg0: i32) -> (i32, i32) {
    %c0_i32 = arith.constant 0 : i32
    %c0_i32_0 = arith.constant 0 : i32
    %c0_i32_1 = arith.constant 0 : i32
    return %c0_i32, %c0_i32_0 : i32, i32
  }
  func.func @transform_3(%arg0: i32) -> (i32, i32) {
    %c0_i32 = arith.constant 0 : i32
    %c0_i32_0 = arith.constant 0 : i32
    %c0_i32_1 = arith.constant 0 : i32
    return %c0_i32, %c0_i32_0 : i32, i32
  }
  func.func @transform_4(%arg0: i32) -> (i32, i32) {
    %c0_i32 = arith.constant 0 : i32
    %c0_i32_0 = arith.constant 0 : i32
    %c0_i32_1 = arith.constant 0 : i32
    return %c0_i32, %c0_i32_0 : i32, i32
  }
  func.func @transform_5(%arg0: i32) -> (i32, i32) {
    %c0_i32 = arith.constant 0 : i32
    %c0_i32_0 = arith.constant 0 : i32
    %c0_i32_1 = arith.constant 0 : i32
    return %c0_i32, %c0_i32_0 : i32, i32
  }
  func.func @transform_6(%arg0: i32) -> (i32, i32) {
    %c0_i32 = arith.constant 0 : i32
    %c0_i32_0 = arith.constant 0 : i32
    %c0_i32_1 = arith.constant 0 : i32
    return %c0_i32, %c0_i32_0 : i32, i32
  }
  func.func @transform_7(%arg0: i32) -> (i32, i32) {
    %c0_i32 = arith.constant 0 : i32
    %c0_i32_0 = arith.constant 0 : i32
    %c0_i32_1 = arith.constant 0 : i32
    return %c0_i32, %c0_i32_0 : i32, i32
  }
  func.func @transform_8(%arg0: i32) -> (i32, i32) {
    %c0_i32 = arith.constant 0 : i32
    %c0_i32_0 = arith.constant 0 : i32
    %c0_i32_1 = arith.constant 0 : i32
    return %c0_i32, %c0_i32_0 : i32, i32
  }
  func.func @transform_9(%arg0: i32) -> (i32, i32) {
    %c0_i32 = arith.constant 0 : i32
    %c0_i32_0 = arith.constant 0 : i32
    %c0_i32_1 = arith.constant 0 : i32
    return %c0_i32, %c0_i32_0 : i32, i32
  }
  func.func @transform_10(%arg0: i32) -> (i32, i32, i32) {
    %c0_i32 = arith.constant 0 : i32
    %c0_i32_0 = arith.constant 0 : i32
    %c0_i32_1 = arith.constant 0 : i32
    return %arg0, %c0_i32, %c0_i32_0 : i32, i32, i32
  }
}

</mosaic_0001>

<llo_original>
// kernel: tpu_custom_call.1
$region0: #{tpu_custom_call.1}
  #allocation0 [shape = 'u32[]', space=smem, size = 0x4, offset = 0x4, fixed_abs, tag = 'smem constant byte address 0x4 - core index']
  #allocation1 [shape = 'u32[144,128]{1,0:T(1,128)}', space=vmem, size = 0x12000, scoped, tag = 'internal scratch']
  %s0 = inlined_call_operand.vmem [shape: f32[2,16,64], index: 0, kind: input, shape index: {}]
  %s1 = inlined_call_operand.hbm [shape: f32[2,16,64], index: 1, kind: input, shape index: {}, may-alias: {1,10}]
  %s2 = inlined_call_operand.vmem [shape: f32[1,64], index: 2, kind: input, shape index: {}]
  %s3 = inlined_call_operand.vmem [shape: f32[1,64], index: 3, kind: input, shape index: {}]
  %s4 = inlined_call_operand.hbm [shape: f32[3,64], index: 4, kind: input, shape index: {}]
  %s5 = inlined_call_operand.hbm [shape: f32[5,64], index: 5, kind: input, shape index: {}]
  %s6 = inlined_call_operand.hbm [shape: f32[3,64], index: 6, kind: input, shape index: {}]
  %s7 = inlined_call_operand.vmem [shape: f32[64,64], index: 7, kind: input, shape index: {}]
  %s8 = inlined_call_operand.hbm [shape: f32[4,64], index: 8, kind: input, shape index: {}]
  %s9 = inlined_call_operand.hbm [shape: f32[4,64], index: 9, kind: input, shape index: {}]
  %s10 = inlined_call_operand.hbm [shape: f32[2,16,64], index: 10, kind: output, shape index: {}, may-alias: {1,10}]
  %s11 = sld [smem:[#allocation0]]
  $region97: #{tpu_custom_call.1} parent=0
    _
  %s13 = ssub.s32 1, %s11
  %s14 = scalar_select 0, %s13, %s11
  $region1: #{tpu_custom_call.1} parent=0
    #allocation2 [shape = 'u8[16384]{0}', space=vmem, size = 0x4000, scoped, tag = 'input window, operand 1']
    #allocation3 [shape = 's32[2]{0}', space=sflag, size = 0x8, scoped, tag = 'scoped memory for tpu_custom_call.1']
    #allocation4 [shape = 's32[2]{0}', space=sflag, size = 0x8, scoped, tag = 'scoped memory for tpu_custom_call.1']
    #allocation5 [shape = 'u8[2048]{0}', space=vmem, size = 0x800, scoped, tag = 'input window, operand 4, single buffered']
    #allocation6 [shape = 's32[1]{0}', space=sflag, size = 0x4, scoped, tag = 'scoped memory for tpu_custom_call.1']
    #allocation7 [shape = 'u8[4096]{0}', space=vmem, size = 0x1000, scoped, tag = 'input window, operand 5, single buffered']
    #allocation8 [shape = 'u8[2048]{0}', space=vmem, size = 0x800, scoped, tag = 'input window, operand 6, single buffered']
    #allocation9 [shape = 's32[1]{0}', space=sflag, size = 0x4, scoped, tag = 'scoped memory for tpu_custom_call.1']
    #allocation10 [shape = 'u8[2048]{0}', space=vmem, size = 0x800, scoped, tag = 'input window, operand 8, single buffered']
    #allocation11 [shape = 'u8[2048]{0}', space=vmem, size = 0x800, scoped, tag = 'input window, operand 9, single buffered']
    #allocation12 [shape = 's32[1]{0}', space=sflag, size = 0x4, scoped, tag = 'scoped memory for tpu_custom_call.1']
    #allocation13 [shape = 'u8[16384]{0}', space=vmem, size = 0x4000, scoped, tag = 'output window, operand 0']
    %15 = vsyncpa [#allocation3], 0
    %s16 = scalar_lea.sflag [#allocation3], 1
    %17 = vsyncpa %s16, 0
    %18 = vsyncpa [#allocation6], 0
    %19 = vsyncpa [#allocation9], 0
    %20 = vsyncpa [#allocation12], 0
    %21 = vsyncpa [#allocation4], 0
    %s22 = scalar_lea.sflag [#allocation4], 1
    %23 = vsyncpa %s22, 0
    loop: start=0, step=1, limit=4
    $region2: #{tpu_custom_call.1} parent=1 // loop_pre_header
      _
    $region3: #{tpu_custom_call.1} parent=1 // loop_header
      %s25 = sphi 0, %s29
      %p26 = scmp.ge.s32.totalorder %s25, 4
      %s35 = sphi 0, %s37
      %s38 = sphi 0, %s35
      %s39 = sphi 0, %s38
      %s55 = sphi 0, %s39
      %s61 = sphi 0, %s63
      %s64 = sphi 0, %s61
      %s65 = sphi 0, %s64
      %s81 = sphi 0, %s65
      %s85 = sphi 0, %s85
      %s87 = sphi 0, %s85
      %s88 = sphi 0, %s87
      %s102 = sphi 0, %s88
      %s106 = sphi 0, %s106
      %s108 = sphi 0, %s106
      %s109 = sphi 0, %s108
      %s123 = sphi 0, %s109
      %s127 = sphi 0, %s127
      %s129 = sphi 0, %s127
      %s130 = sphi 0, %s129
      %s144 = sphi 0, %s130
      %s148 = sphi 0, %s148
      %s150 = sphi 0, %s148
      %s151 = sphi 0, %s150
      %s165 = sphi 0, %s151
      %s169 = sphi 0, %s169
      %s171 = sphi 0, %s169
      %s172 = sphi 0, %s171
      %s186 = sphi 0, %s172
      %s190 = sphi 0, %s190
      %s192 = sphi 0, %s190
      %s193 = sphi 0, %s192
      %s207 = sphi 0, %s193
      %s211 = sphi 0, %s211
      %s213 = sphi 0, %s211
      %s214 = sphi 0, %s213
      %s228 = sphi 0, %s214
      %s232 = sphi 0, %s232
      %s234 = sphi 0, %s232
      %s235 = sphi 0, %s234
      %s249 = sphi 0, %s235
      %s255 = sphi 0, %s257
      %s258 = sphi 0, %s255
      %s259 = sphi 0, %s258
      %s275 = sphi 0, %s259
    $region4: #{tpu_custom_call.1} parent=1 // loop_header_branch
      %28 = sbr.rel (%p26) target = $region8
    $region5: #{tpu_custom_call.1} parent=1 // loop_body
      %s30 = ssub.s32 %s25, 1
      %s31 = ssub.s32 %s25, 2
      %s32 = sadd.s32 %s25, 1
      %s33 = ssub.s32 %s25, %s32
      %p34 = scmp.eq.s32.totalorder %s33, 0
      %s36 = sadd.s32 %s35, 1
      %s37 = scalar_select %p34, %s35, %s36
      %p40 = pneg %p34
      %p41 = scmp.eq.s32.totalorder %s25, 1
      %p42 = por %p40, %p41
      %p43 = scmp.ne.s32.totalorder %s35, %s38
      %p44 = scmp.eq.s32.totalorder %s25, 0
      %p45 = por %p43, %p44
      %p46 = scmp.ne.s32.totalorder %s35, %s38
      %p47 = scmp.eq.s32.totalorder %s30, 1
      %p48 = por %p46, %p47
      %p49 = scmp.ne.s32.totalorder %s38, %s39
      %p50 = scmp.eq.s32.totalorder %s30, 0
      %p51 = por %p49, %p50
      %p52 = scmp.ne.s32.totalorder %s38, %s39
      %p53 = scmp.eq.s32.totalorder %s31, 1
      %p54 = por %p52, %p53
      %p56 = scmp.ne.s32.totalorder %s39, %s55
      %p57 = scmp.eq.s32.totalorder %s31, 0
      %p58 = por %p56, %p57
      %s59 = ssub.s32 %s25, %s32
      %p60 = scmp.eq.s32.totalorder %s59, 0
      %s62 = sadd.s32 %s61, 1
      %s63 = scalar_select %p60, %s61, %s62
      %p66 = pneg %p60
      %p67 = scmp.eq.s32.totalorder %s25, 1
      %p68 = por %p66, %p67
      %p69 = scmp.ne.s32.totalorder %s61, %s64
      %p70 = scmp.eq.s32.totalorder %s25, 0
      %p71 = por %p69, %p70
      %p72 = scmp.ne.s32.totalorder %s61, %s64
      %p73 = scmp.eq.s32.totalorder %s30, 1
      %p74 = por %p72, %p73
      %p75 = scmp.ne.s32.totalorder %s64, %s65
      %p76 = scmp.eq.s32.totalorder %s30, 0
      %p77 = por %p75, %p76
      %p78 = scmp.ne.s32.totalorder %s64, %s65
      %p79 = scmp.eq.s32.totalorder %s31, 1
      %p80 = por %p78, %p79
      %p82 = scmp.ne.s32.totalorder %s65, %s81
      %p83 = scmp.eq.s32.totalorder %s31, 0
      %p84 = por %p82, %p83
      %s86 = sadd.s32 %s85, 1
      %p89 = scmp.eq.s32.totalorder %s25, 1
      %p90 = scmp.ne.s32.totalorder %s85, %s87
      %p91 = scmp.eq.s32.totalorder %s25, 0
      %p92 = por %p90, %p91
      %p93 = scmp.ne.s32.totalorder %s85, %s87
      %p94 = scmp.eq.s32.totalorder %s30, 1
      %p95 = por %p93, %p94
      %p96 = scmp.ne.s32.totalorder %s87, %s88
      %p97 = scmp.eq.s32.totalorder %s30, 0
      %p98 = por %p96, %p97
      %p99 = scmp.ne.s32.totalorder %s87, %s88
      %p100 = scmp.eq.s32.totalorder %s31, 1
      %p101 = por %p99, %p100
      %p103 = scmp.ne.s32.totalorder %s88, %s102
      %p104 = scmp.eq.s32.totalorder %s31, 0
      %p105 = por %p103, %p104
      %s107 = sadd.s32 %s106, 1
      %p110 = scmp.eq.s32.totalorder %s25, 1
      %p111 = scmp.ne.s32.totalorder %s106, %s108
      %p112 = scmp.eq.s32.totalorder %s25, 0
      %p113 = por %p111, %p112
      %p114 = scmp.ne.s32.totalorder %s106, %s108
      %p115 = scmp.eq.s32.totalorder %s30, 1
      %p116 = por %p114, %p115
      %p117 = scmp.ne.s32.totalorder %s108, %s109
      %p118 = scmp.eq.s32.totalorder %s30, 0
      %p119 = por %p117, %p118
      %p120 = scmp.ne.s32.totalorder %s108, %s109
      %p121 = scmp.eq.s32.totalorder %s31, 1
      %p122 = por %p120, %p121
      %p124 = scmp.ne.s32.totalorder %s109, %s123
      %p125 = scmp.eq.s32.totalorder %s31, 0
      %p126 = por %p124, %p125
      %s128 = sadd.s32 %s127, 1
      %p131 = scmp.eq.s32.totalorder %s25, 1
      %p132 = scmp.ne.s32.totalorder %s127, %s129
      %p133 = scmp.eq.s32.totalorder %s25, 0
      %p134 = por %p132, %p133
      %p135 = scmp.ne.s32.totalorder %s127, %s129
      %p136 = scmp.eq.s32.totalorder %s30, 1
      %p137 = por %p135, %p136
      %p138 = scmp.ne.s32.totalorder %s129, %s130
      %p139 = scmp.eq.s32.totalorder %s30, 0
      %p140 = por %p138, %p139
      %p141 = scmp.ne.s32.totalorder %s129, %s130
      %p142 = scmp.eq.s32.totalorder %s31, 1
      %p143 = por %p141, %p142
      %p145 = scmp.ne.s32.totalorder %s130, %s144
      %p146 = scmp.eq.s32.totalorder %s31, 0
      %p147 = por %p145, %p146
      %s149 = sadd.s32 %s148, 1
      %p152 = scmp.eq.s32.totalorder %s25, 1
      %p153 = scmp.ne.s32.totalorder %s148, %s150
      %p154 = scmp.eq.s32.totalorder %s25, 0
      %p155 = por %p153, %p154
      %p156 = scmp.ne.s32.totalorder %s148, %s150
      %p157 = scmp.eq.s32.totalorder %s30, 1
      %p158 = por %p156, %p157
      %p159 = scmp.ne.s32.totalorder %s150, %s151
      %p160 = scmp.eq.s32.totalorder %s30, 0
      %p161 = por %p159, %p160
      %p162 = scmp.ne.s32.totalorder %s150, %s151
      %p163 = scmp.eq.s32.totalorder %s31, 1
      %p164 = por %p162, %p163
      %p166 = scmp.ne.s32.totalorder %s151, %s165
      %p167 = scmp.eq.s32.totalorder %s31, 0
      %p168 = por %p166, %p167
      %s170 = sadd.s32 %s169, 1
      %p173 = scmp.eq.s32.totalorder %s25, 1
      %p174 = scmp.ne.s32.totalorder %s169, %s171
      %p175 = scmp.eq.s32.totalorder %s25, 0
      %p176 = por %p174, %p175
      %p177 = scmp.ne.s32.totalorder %s169, %s171
      %p178 = scmp.eq.s32.totalorder %s30, 1
      %p179 = por %p177, %p178
      %p180 = scmp.ne.s32.totalorder %s171, %s172
      %p181 = scmp.eq.s32.totalorder %s30, 0
      %p182 = por %p180, %p181
      %p183 = scmp.ne.s32.totalorder %s171, %s172
      %p184 = scmp.eq.s32.totalorder %s31, 1
      %p185 = por %p183, %p184
      %p187 = scmp.ne.s32.totalorder %s172, %s186
      %p188 = scmp.eq.s32.totalorder %s31, 0
      %p189 = por %p187, %p188
      %s191 = sadd.s32 %s190, 1
      %p194 = scmp.eq.s32.totalorder %s25, 1
      %p195 = scmp.ne.s32.totalorder %s190, %s192
      %p196 = scmp.eq.s32.totalorder %s25, 0
      %p197 = por %p195, %p196
      %p198 = scmp.ne.s32.totalorder %s190, %s192
      %p199 = scmp.eq.s32.totalorder %s30, 1
      %p200 = por %p198, %p199
      %p201 = scmp.ne.s32.totalorder %s192, %s193
      %p202 = scmp.eq.s32.totalorder %s30, 0
      %p203 = por %p201, %p202
      %p204 = scmp.ne.s32.totalorder %s192, %s193
      %p205 = scmp.eq.s32.totalorder %s31, 1
      %p206 = por %p204, %p205
      %p208 = scmp.ne.s32.totalorder %s193, %s207
      %p209 = scmp.eq.s32.totalorder %s31, 0
      %p210 = por %p208, %p209
      %s212 = sadd.s32 %s211, 1
      %p215 = scmp.eq.s32.totalorder %s25, 1
      %p216 = scmp.ne.s32.totalorder %s211, %s213
      %p217 = scmp.eq.s32.totalorder %s25, 0
      %p218 = por %p216, %p217
      %p219 = scmp.ne.s32.totalorder %s211, %s213
      %p220 = scmp.eq.s32.totalorder %s30, 1
      %p221 = por %p219, %p220
      %p222 = scmp.ne.s32.totalorder %s213, %s214
      %p223 = scmp.eq.s32.totalorder %s30, 0
      %p224 = por %p222, %p223
      %p225 = scmp.ne.s32.totalorder %s213, %s214
      %p226 = scmp.eq.s32.totalorder %s31, 1
      %p227 = por %p225, %p226
      %p229 = scmp.ne.s32.totalorder %s214, %s228
      %p230 = scmp.eq.s32.totalorder %s31, 0
      %p231 = por %p229, %p230
      %s233 = sadd.s32 %s232, 1
      %p236 = scmp.eq.s32.totalorder %s25, 1
      %p237 = scmp.ne.s32.totalorder %s232, %s234
      %p238 = scmp.eq.s32.totalorder %s25, 0
      %p239 = por %p237, %p238
      %p240 = scmp.ne.s32.totalorder %s232, %s234
      %p241 = scmp.eq.s32.totalorder %s30, 1
      %p242 = por %p240, %p241
      %p243 = scmp.ne.s32.totalorder %s234, %s235
      %p244 = scmp.eq.s32.totalorder %s30, 0
      %p245 = por %p243, %p244
      %p246 = scmp.ne.s32.totalorder %s234, %s235
      %p247 = scmp.eq.s32.totalorder %s31, 1
      %p248 = por %p246, %p247
      %p250 = scmp.ne.s32.totalorder %s235, %s249
      %p251 = scmp.eq.s32.totalorder %s31, 0
      %p252 = por %p250, %p251
      %s253 = ssub.s32 %s25, %s32
      %p254 = scmp.eq.s32.totalorder %s253, 0
      %s256 = sadd.s32 %s255, 1
      %s257 = scalar_select %p254, %s255, %s256
      %p260 = pneg %p254
      %p261 = scmp.eq.s32.totalorder %s25, 1
      %p262 = por %p260, %p261
      %p263 = scmp.ne.s32.totalorder %s255, %s258
      %p264 = scmp.eq.s32.totalorder %s25, 0
      %p265 = por %p263, %p264
      %p266 = scmp.ne.s32.totalorder %s255, %s258
      %p267 = scmp.eq.s32.totalorder %s30, 1
      %p268 = por %p266, %p267
      %p269 = scmp.ne.s32.totalorder %s258, %s259
      %p270 = scmp.eq.s32.totalorder %s30, 0
      %p271 = por %p269, %p270
      %p272 = scmp.ne.s32.totalorder %s258, %s259
      %p273 = scmp.eq.s32.totalorder %s31, 1
      %p274 = por %p272, %p273
      %p276 = scmp.ne.s32.totalorder %s259, %s275
      %p277 = scmp.eq.s32.totalorder %s31, 0
      %p278 = por %p276, %p277
      %p279 = scmp.le.s32.totalorder 1, %s25
      %p280 = scmp.lt.s32.totalorder %s25, 3
      %p281 = pnand %p279, %p280
      %p282 = pneg %p281
      // Predicated region
      $region9: #{tpu_custom_call.1} parent=5 // pred_check
        _
      $region10: #{tpu_custom_call.1} parent=5 // pred_check_branch
        %284 = sbr.rel (%p281) target = $region12
      $region11: #{tpu_custom_call.1} parent=5 // pred_region
        %s285 = ssub.s32 %s25, 1
        // Predicated region
        $region13: #{tpu_custom_call.1} parent=11 // pred_check
          %p286 = pneg %p98
        $region14: #{tpu_custom_call.1} parent=11 // pred_check_branch
          %288 = sbr.rel (%p286) target = $region16
        $region15: #{tpu_custom_call.1} parent=11 // pred_region
          _
        $region16: #{tpu_custom_call.1} parent=11 // pred_fallthru
          _
        // Predicated region
        $region17: #{tpu_custom_call.1} parent=11 // pred_check
          %p289 = pneg %p119
        $region18: #{tpu_custom_call.1} parent=11 // pred_check_branch
          %291 = sbr.rel (%p289) target = $region20
        $region19: #{tpu_custom_call.1} parent=11 // pred_region
          _
        $region20: #{tpu_custom_call.1} parent=11 // pred_fallthru
          _
        // Predicated region
        $region21: #{tpu_custom_call.1} parent=11 // pred_check
          %p292 = pneg %p140
        $region22: #{tpu_custom_call.1} parent=11 // pred_check_branch
          %294 = sbr.rel (%p292) target = $region24
        $region23: #{tpu_custom_call.1} parent=11 // pred_region
          %s296 = ssub.s32 64, 64
          %297 = vsyncadd [#allocation6], %s296
          %s299 = sshll.u32 [#allocation5], 4
          %s300 = int_to_ptr.vmem [resolvable:$true] %s299
          %302 = dma.hbm_to_vmem [thread:$0]  %s4, 64, %s300, [#allocation6]
        $region24: #{tpu_custom_call.1} parent=11 // pred_fallthru
          _
        // Predicated region
        $region25: #{tpu_custom_call.1} parent=11 // pred_check
          %p303 = pneg %p161
        $region26: #{tpu_custom_call.1} parent=11 // pred_check_branch
          %305 = sbr.rel (%p303) target = $region28
        $region27: #{tpu_custom_call.1} parent=11 // pred_region
          %s307 = ssub.s32 128, 128
          %308 = vsyncadd [#allocation6], %s307
          %s310 = sshll.u32 [#allocation7], 4
          %s311 = int_to_ptr.vmem [resolvable:$true] %s310
          %313 = dma.hbm_to_vmem [thread:$0]  %s5, 128, %s311, [#allocation6]
        $region28: #{tpu_custom_call.1} parent=11 // pred_fallthru
          _
        // Predicated region
        $region29: #{tpu_custom_call.1} parent=11 // pred_check
          %p314 = pneg %p182
        $region30: #{tpu_custom_call.1} parent=11 // pred_check_branch
          %316 = sbr.rel (%p314) target = $region32
        $region31: #{tpu_custom_call.1} parent=11 // pred_region
          %s318 = ssub.s32 64, 64
          %319 = vsyncadd [#allocation9], %s318
          %s321 = sshll.u32 [#allocation8], 4
          %s322 = int_to_ptr.vmem [resolvable:$true] %s321
          %324 = dma.hbm_to_vmem [thread:$0]  %s6, 64, %s322, [#allocation9]
        $region32: #{tpu_custom_call.1} parent=11 // pred_fallthru
          _
        // Predicated region
        $region33: #{tpu_custom_call.1} parent=11 // pred_check
          %p325 = pneg %p203
        $region34: #{tpu_custom_call.1} parent=11 // pred_check_branch
          %327 = sbr.rel (%p325) target = $region36
        $region35: #{tpu_custom_call.1} parent=11 // pred_region
          _
        $region36: #{tpu_custom_call.1} parent=11 // pred_fallthru
          _
        // Predicated region
        $region37: #{tpu_custom_call.1} parent=11 // pred_check
          %p328 = pneg %p224
        $region38: #{tpu_custom_call.1} parent=11 // pred_check_branch
          %330 = sbr.rel (%p328) target = $region40
        $region39: #{tpu_custom_call.1} parent=11 // pred_region
          %s332 = ssub.s32 64, 64
          %333 = vsyncadd [#allocation9], %s332
          %s335 = sshll.u32 [#allocation10], 4
          %s336 = int_to_ptr.vmem [resolvable:$true] %s335
          %338 = dma.hbm_to_vmem [thread:$0]  %s8, 64, %s336, [#allocation9]
        $region40: #{tpu_custom_call.1} parent=11 // pred_fallthru
          _
        // Predicated region
        $region41: #{tpu_custom_call.1} parent=11 // pred_check
          %p339 = pneg %p245
        $region42: #{tpu_custom_call.1} parent=11 // pred_check_branch
          %341 = sbr.rel (%p339) target = $region44
        $region43: #{tpu_custom_call.1} parent=11 // pred_region
          %s343 = ssub.s32 64, 64
          %344 = vsyncadd [#allocation12], %s343
          %s346 = sshll.u32 [#allocation11], 4
          %s347 = int_to_ptr.vmem [resolvable:$true] %s346
          %349 = dma.hbm_to_vmem [thread:$0]  %s9, 64, %s347, [#allocation12]
        $region44: #{tpu_custom_call.1} parent=11 // pred_fallthru
          _
      $region12: #{tpu_custom_call.1} parent=5 // pred_fallthru
        _
      %p350 = scmp.lt.s32.totalorder %s25, 2
      // Predicated region
      $region45: #{tpu_custom_call.1} parent=5 // pred_check
        %p351 = pneg %p350
      $region46: #{tpu_custom_call.1} parent=5 // pred_check_branch
        %353 = sbr.rel (%p351) target = $region48
      $region47: #{tpu_custom_call.1} parent=5 // pred_region
        // Predicated region
        $region49: #{tpu_custom_call.1} parent=47 // pred_check
          %p354 = pneg %p45
        $region50: #{tpu_custom_call.1} parent=47 // pred_check_branch
          %356 = sbr.rel (%p354) target = $region52
        $region51: #{tpu_custom_call.1} parent=47 // pred_region
          %p357 = scmp.lt.s32.totalorder %s25, 1
          %s358 = scalar_select %p357, %s25, 1
          %s359 = smul.addr %s358, 2
          %s360 = smul.addr %s359, 8
          %s361 = scalar_lea.vmem %s0, %s360
        $region52: #{tpu_custom_call.1} parent=47 // pred_fallthru
          _
        // Predicated region
        $region53: #{tpu_custom_call.1} parent=47 // pred_check
          %p362 = pneg %p71
        $region54: #{tpu_custom_call.1} parent=47 // pred_check_branch
          %364 = sbr.rel (%p362) target = $region56
        $region55: #{tpu_custom_call.1} parent=47 // pred_region
          %s365 = sand.u32 %s61, 1
          %s366 = scalar_lea.sflag [#allocation3], %s365
          %s367 = sand.u32 %s61, 1
          %s368 = smul.addr %s367, 16
          %s369 = scalar_lea.vmem [#allocation2], %s368
          %s371 = ssub.s32 256, 256
          %372 = vsyncadd %s366, %s371
          %s373 = smul.addr %s25, 2
          %s374 = smul.addr %s373, 128
          %s375 = scalar_lea.hbm %s1, %s374
          %s376 = sshll.u32 %s369, 4
          %s377 = int_to_ptr.vmem [resolvable:$true] %s376
          %382 = dma.hbm_to_vmem [thread:$0]  %s375, 256, %s377, %s366, 128, 128, 8
        $region56: #{tpu_custom_call.1} parent=47 // pred_fallthru
          _
      $region48: #{tpu_custom_call.1} parent=5 // pred_fallthru
        _
      %p383 = scmp.le.s32.totalorder 1, %s25
      %p384 = scmp.lt.s32.totalorder %s25, 3
      %p385 = pnand %p383, %p384
      %p386 = pneg %p385
      // Predicated region
      $region57: #{tpu_custom_call.1} parent=5 // pred_check
        _
      $region58: #{tpu_custom_call.1} parent=5 // pred_check_branch
        %388 = sbr.rel (%p385) target = $region60
      $region59: #{tpu_custom_call.1} parent=5 // pred_region
        %s389 = ssub.s32 %s25, 1
        %s390 = sand.u32 %s64, 1
        %s391 = scalar_lea.sflag [#allocation3], %s390
        %s392 = sand.u32 %s64, 1
        %s393 = smul.addr %s392, 16
        %s394 = scalar_lea.vmem [#allocation2], %s393
        // Predicated region
        $region61: #{tpu_custom_call.1} parent=59 // pred_check
          %p395 = pneg %p77
        $region62: #{tpu_custom_call.1} parent=59 // pred_check_branch
          %397 = sbr.rel (%p395) target = $region64
        $region63: #{tpu_custom_call.1} parent=59 // pred_region
          %398 = dma.done %s391, 256
        $region64: #{tpu_custom_call.1} parent=59 // pred_fallthru
          _
        // Predicated region
        $region65: #{tpu_custom_call.1} parent=59 // pred_check
          %p399 = pneg %p140
        $region66: #{tpu_custom_call.1} parent=59 // pred_check_branch
          %401 = sbr.rel (%p399) target = $region68
        $region67: #{tpu_custom_call.1} parent=59 // pred_region
          %402 = dma.done [#allocation6], 64
        $region68: #{tpu_custom_call.1} parent=59 // pred_fallthru
          _
        // Predicated region
        $region69: #{tpu_custom_call.1} parent=59 // pred_check
          %p403 = pneg %p161
        $region70: #{tpu_custom_call.1} parent=59 // pred_check_branch
          %405 = sbr.rel (%p403) target = $region72
        $region71: #{tpu_custom_call.1} parent=59 // pred_region
          %406 = dma.done [#allocation6], 128
        $region72: #{tpu_custom_call.1} parent=59 // pred_fallthru
          _
        // Predicated region
        $region73: #{tpu_custom_call.1} parent=59 // pred_check
          %p407 = pneg %p182
        $region74: #{tpu_custom_call.1} parent=59 // pred_check_branch
          %409 = sbr.rel (%p407) target = $region76
        $region75: #{tpu_custom_call.1} parent=59 // pred_region
          %410 = dma.done [#allocation9], 64
        $region76: #{tpu_custom_call.1} parent=59 // pred_fallthru
          _
        // Predicated region
        $region77: #{tpu_custom_call.1} parent=59 // pred_check
          %p411 = pneg %p224
        $region78: #{tpu_custom_call.1} parent=59 // pred_check_branch
          %413 = sbr.rel (%p411) target = $region80
        $region79: #{tpu_custom_call.1} parent=59 // pred_region
          %414 = dma.done [#allocation9], 64
        $region80: #{tpu_custom_call.1} parent=59 // pred_fallthru
          _
        // Predicated region
        $region81: #{tpu_custom_call.1} parent=59 // pred_check
          %p415 = pneg %p245
        $region82: #{tpu_custom_call.1} parent=59 // pred_check_branch
          %417 = sbr.rel (%p415) target = $region84
        $region83: #{tpu_custom_call.1} parent=59 // pred_region
          %418 = dma.done [#allocation12], 64
        $region84: #{tpu_custom_call.1} parent=59 // pred_fallthru
          _
        %p419 = scmp.lt.s32.totalorder %s30, 1
        %s420 = scalar_select %p419, %s30, 1
        %s421 = smul.addr %s420, 2
        %s422 = smul.addr %s421, 8
        %s423 = scalar_lea.vmem %s0, %s422
        %p424 = pneg %p51
        %p425 = pneg %p48
        %s426 = sand.u32 %s64, 1
        %s427 = scalar_lea.sflag [#allocation3], %s426
        %s428 = sand.u32 %s64, 1
        %s429 = smul.addr %s428, 16
        %s430 = scalar_lea.vmem [#allocation2], %s429
        %p431 = pneg %p77
        %p432 = pneg %p74
        %p433 = pneg %p98
        %p434 = pneg %p95
        %p435 = pneg %p119
        %p436 = pneg %p116
        %p437 = pneg %p140
        %p438 = pneg %p137
        %p439 = pneg %p161
        %p440 = pneg %p158
        %p441 = pneg %p182
        %p442 = pneg %p179
        %p443 = pneg %p203
        %p444 = pneg %p200
        %p445 = pneg %p224
        %p446 = pneg %p221
        %p447 = pneg %p245
        %p448 = pneg %p242
        %p449 = pneg %p271
        %p450 = pneg %p268
        %s451 = sand.u32 %s258, 1
        %s452 = scalar_lea.sflag [#allocation4], %s451
        %s453 = sand.u32 %s258, 1
        %s454 = smul.addr %s453, 16
        %s455 = scalar_lea.vmem [#allocation13], %s454
        %p456 = scmp.lt.s32.totalorder %s30, 1
        %s457 = scalar_select %p456, %s30, 1
        %s458 = smul.addr %s457, 2
        %s459 = smul.addr %s458, 8
        %s460 = scalar_lea.vmem %s0, %s459
        %v461 = vld [vmem:[%s460] sm:$0xff]
        %v462 = vld [vmem:[%s460 + $0x8] sm:$0xff]
        %v463 = vld [vmem:[%s394] sm:$0xff]
        %v464 = vld [vmem:[%s394 + $0x8] sm:$0xff]
        %v465 = vlaneseq
        %v466 = vshrl.u32 %v465, 7
        %v467 = vadd.s32 %v466, 8
        %vm468 = vcmask 523264
        %v469 = vsel %vm468, %v461, 0.0
        %470 = vadd.xlane.f32.xlu0 %v469
        %v471 = vpop.xlane.xlu0 %470
        %v472 = vsel %vm468, %v462, 0.0
        %473 = vadd.xlane.f32.xlu0 %v472
        %v474 = vpop.xlane.xlu0 %473
        %v475 = vrcp.pop 64.0
        %v476 = vmul.f32 %v471, %v475
        %v477 = vmul.f32 %v474, %v475
        %v478 = vsub.f32 %v461, %v476
        %v479 = vsub.f32 %v462, %v477
        %v480 = vmul.f32 %v478, %v478
        %v481 = vmul.f32 %v479, %v479
        %v482 = vsel %vm468, %v480, 0.0
        %483 = vadd.xlane.f32.xlu0 %v482
        %v484 = vpop.xlane.xlu0 %483
        %v485 = vsel %vm468, %v481, 0.0
        %486 = vadd.xlane.f32.xlu0 %v485
        %v487 = vpop.xlane.xlu0 %486
        %v488 = vmul.f32 %v484, %v475
        %v489 = vmul.f32 %v487, %v475
        %v490 = vadd.f32 %v488, 1e-05
        %v491 = vadd.f32 %v489, 1e-05
        %v492 = vrsqrt.pop %v490
        %v493 = vrsqrt.pop %v491
        %v494 = vmul.f32 %v478, %v492
        %v495 = vmul.f32 %v479, %v493
        %v496 = vld [vmem:[%s2] sm:$0x1]
        %v498 = vlaneseq
        %v499 = vshrl.u32 %v498, 7
        %v500 = vsub.s32 0, %v499
        %v501 = vrot.slane %v496, %v500
        %v503 = vmul.f32 %v494, %v501
        %v504 = vmul.f32 %v495, %v501
        %v505 = vld [vmem:[%s3] sm:$0x1]
        %v507 = vlaneseq
        %v508 = vshrl.u32 %v507, 7
        %v509 = vsub.s32 0, %v508
        %v510 = vrot.slane %v505, %v509
        %v512 = vadd.f32 %v503, %v510
        %v513 = vadd.f32 %v504, %v510
        %v514 = vrot.slane %v512, 7
        %v515 = vrot.slane %v513, 7
        %vm516 = vcmp.lt.s32.totalorder %v466, 1
        %v517 = vsel %vm516, %v514, %v515
        %v518 = vsel %vm516, %v515, %v514
        %vm519 = vcmp.ge.s32.totalorder %v466, 1
        %vm520 = vcmp.ge.s32.totalorder %v467, 1
        %v521 = vsel %vm519, %v518, 0.0
        %v522 = vsel %vm520, %v517, 0.0
        %v523 = vld [vmem:[#allocation5] sm:$0x1]
        %v524 = vlaneseq
        %v525 = vshrl.u32 %v524, 7
        %v526 = vsub.s32 0, %v525
        %v527 = vrot.slane %v523, %v526
        %v528 = vmul.f32 %v521, %v527
        %v529 = vmul.f32 %v522, %v527
        %v530 = vld [vmem:[#allocation5 + $0x1] sm:$0x1]
        %v531 = vlaneseq
        %v532 = vshrl.u32 %v531, 7
        %v533 = vsub.s32 0, %v532
        %v534 = vrot.slane %v530, %v533
        %v535 = vmul.f32 %v512, %v534
        %v536 = vmul.f32 %v513, %v534
        %v537 = vadd.f32 %v528, %v535
        %v538 = vadd.f32 %v529, %v536
        %v539 = vrot.slane %v512, 1
        %v540 = vrot.slane %v513, 1
        %vm541 = vcmp.lt.s32.totalorder %v466, 7
        %v542 = vsel %vm541, %v539, %v540
        %v543 = vsel %vm541, %v540, %v539
        %vm544 = vcmp.lt.s32.totalorder %v466, 15
        %vm545 = vcmp.lt.s32.totalorder %v467, 15
        %v546 = vsel %vm544, %v542, 0.0
        %v547 = vsel %vm545, %v543, 0.0
        %v548 = vld [vmem:[#allocation5 + $0x2] sm:$0x1]
        %v549 = vlaneseq
        %v550 = vshrl.u32 %v549, 7
        %v551 = vsub.s32 0, %v550
        %v552 = vrot.slane %v548, %v551
        %v553 = vmul.f32 %v546, %v552
        %v554 = vmul.f32 %v547, %v552
        %v555 = vadd.f32 %v537, %v553
        %v556 = vadd.f32 %v538, %v554
        %v557 = vld [vmem:[%s7] sm:$0xff]
        %v558 = vld [vmem:[%s7 + $0x8] sm:$0xff]
        %v559 = vld [vmem:[%s7 + $0x10] sm:$0xff]
        %v560 = vld [vmem:[%s7 + $0x18] sm:$0xff]
        %v561 = vld [vmem:[%s7 + $0x20] sm:$0xff]
        %v562 = vld [vmem:[%s7 + $0x28] sm:$0xff]
        %v563 = vld [vmem:[%s7 + $0x30] sm:$0xff]
        %v564 = vld [vmem:[%s7 + $0x38] sm:$0xff]
        %v566 = vsel %vm468, %v555, 0
        %v569 = vsel %vm468, %v556, 0
        %571 = vmatprep.subr.mxu0 0.0
        %v572 = vand.u32 %v557, 4294901760
        %573 = vmatpush1.msra.mxu0 %v572
        %574 = vmatprep.subr.mxu0 0.0
        %v575 = vand.u32 %v558, 4294901760
        %576 = vmatpush1.msra.mxu0 %v575
        %577 = vmatprep.subr.mxu0 0.0
        %v578 = vand.u32 %v559, 4294901760
        %579 = vmatpush1.msra.mxu0 %v578
        %580 = vmatprep.subr.mxu0 0.0
        %v581 = vand.u32 %v560, 4294901760
        %582 = vmatpush1.msra.mxu0 %v581
        %583 = vmatprep.subr.mxu0 0.0
        %v584 = vand.u32 %v561, 4294901760
        %585 = vmatpush1.msra.mxu0 %v584
        %586 = vmatprep.subr.mxu0 0.0
        %v587 = vand.u32 %v562, 4294901760
        %588 = vmatpush1.msra.mxu0 %v587
        %589 = vmatprep.subr.mxu0 0.0
        %v590 = vand.u32 %v563, 4294901760
        %591 = vmatpush1.msra.mxu0 %v590
        %592 = vmatprep.subr.mxu0 0.0
        %v593 = vand.u32 %v564, 4294901760
        %594 = vmatpush1.msra.mxu0 %v593
        %595 = vmatprep.subr.mxu0 0.0
        %596 = vmatpush1.msra.mxu0 0.0
        %597 = vmatprep.subr.mxu0 0.0
        %598 = vmatpush1.msra.mxu0 0.0
        %599 = vmatprep.subr.mxu0 0.0
        %600 = vmatpush1.msra.mxu0 0.0
        %601 = vmatprep.subr.mxu0 0.0
        %602 = vmatpush1.msra.mxu0 0.0
        %603 = vmatprep.subr.mxu0 0.0
        %604 = vmatpush1.msra.mxu0 0.0
        %605 = vmatprep.subr.mxu0 0.0
        %606 = vmatpush1.msra.mxu0 0.0
        %607 = vmatprep.subr.mxu0 0.0
        %608 = vmatpush1.msra.mxu0 0.0
        %609 = vmatprep.subr.mxu0 0.0
        %610 = vmatpush1.msra.mxu0 0.0
        %611 = vmatprep.subr.mxu0 0.0
        %612 = vmatpush1.msra.mxu0 0.0
        %613 = vmatprep.subr.mxu0 0.0
        %614 = vmatpush1.msra.mxu0 0.0
        %615 = vmatprep.subr.mxu0 0.0
        %616 = vmatpush1.msra.mxu0 0.0
        %617 = vmatprep.subr.mxu0 0.0
        %618 = vmatpush1.msra.mxu0 0.0
        %619 = vmatprep.subr.mxu0 0.0
        %620 = vmatpush1.msra.mxu0 0.0
        %621 = vmatprep.subr.mxu0 0.0
        %622 = vmatpush1.msra.mxu0 0.0
        %623 = vmatprep.subr.mxu0 0.0
        %624 = vmatpush1.msra.mxu0 0.0
        %625 = vmatprep.subr.mxu0 0.0
        %626 = vmatpush1.msra.mxu0 0.0
        %627 = vmatprep.subr.mxu0 0.0
        %628 = vmatpush1.msra.mxu0 0.0
        %629 = vmatprep.subr.mxu0 0.0
        %630 = vmatpush1.msra.mxu0 0.0
        %631 = vmatprep.subr.mxu0 0.0
        %632 = vmatpush1.msra.mxu0 0.0
        %633 = vmatprep.subr.mxu0 0.0
        %634 = vmatpush1.msra.mxu0 0.0
        %635 = vmatprep.subr.mxu0 0.0
        %636 = vmatpush1.msra.mxu0 0.0
        %637 = vmatprep.subr.mxu0 0.0
        %638 = vmatpush1.msra.mxu0 0.0
        %639 = vmatprep.subr.mxu0 0.0
        %640 = vmatpush1.msra.mxu0 0.0
        %641 = vmatprep.subr.mxu0 0.0
        %642 = vmatpush1.msra.mxu0 0.0
        %643 = vmatprep.mubr.f32.mxu0 0.0
        %v644 = vand.u32 %v566, 4294901760
        %v645 = vsub.f32 %v566, %v644
        %v646 = vand.u32 %v645, 4294901760
        %v647 = vsub.f32 %v645, %v646
        %v648 = vand.u32 %v647, 4294901760
        %649 = vmatmul.mubr.f32.gmra.mrb[0].mxu0 %v648
        %v650 = vpop.f32.mrb[0].mxu0
        %v651 = vadd.f32 0.0, %v650
        %v652 = vpop.f32.mrb[0].mxu0
        %653 = vmatprep.mubr.f32.mxu0 0.0
        %v654 = vand.u32 %v569, 4294901760
        %v655 = vsub.f32 %v569, %v654
        %v656 = vand.u32 %v655, 4294901760
        %v657 = vsub.f32 %v655, %v656
        %v658 = vand.u32 %v657, 4294901760
        %659 = vmatmul.mubr.f32.gmra.mrb[0].mxu0 %v658
        %v660 = vpop.f32.mrb[0].mxu0
        %v661 = vadd.f32 0.0, %v660
        %v662 = vpop.f32.mrb[0].mxu0
        %663 = vdwg.mxu0
        %664 = vmatprep.subr.mxu0 0.0
        %v665 = vand.u32 %v557, 4294901760
        %v666 = vsub.f32 %v557, %v665
        %v667 = vand.u32 %v666, 4294901760
        %v668 = vsub.f32 %v666, %v667
        %v669 = vand.u32 %v668, 4294901760
        %670 = vmatpush1.msra.mxu0 %v669
        %671 = vmatprep.subr.mxu0 0.0
        %v672 = vand.u32 %v558, 4294901760
        %v673 = vsub.f32 %v558, %v672
        %v674 = vand.u32 %v673, 4294901760
        %v675 = vsub.f32 %v673, %v674
        %v676 = vand.u32 %v675, 4294901760
        %677 = vmatpush1.msra.mxu0 %v676
        %678 = vmatprep.subr.mxu0 0.0
        %v679 = vand.u32 %v559, 4294901760
        %v680 = vsub.f32 %v559, %v679
        %v681 = vand.u32 %v680, 4294901760
        %v682 = vsub.f32 %v680, %v681
        %v683 = vand.u32 %v682, 4294901760
        %684 = vmatpush1.msra.mxu0 %v683
        %685 = vmatprep.subr.mxu0 0.0
        %v686 = vand.u32 %v560, 4294901760
        %v687 = vsub.f32 %v560, %v686
        %v688 = vand.u32 %v687, 4294901760
        %v689 = vsub.f32 %v687, %v688
        %v690 = vand.u32 %v689, 4294901760
        %691 = vmatpush1.msra.mxu0 %v690
        %692 = vmatprep.subr.mxu0 0.0
        %v693 = vand.u32 %v561, 4294901760
        %v694 = vsub.f32 %v561, %v693
        %v695 = vand.u32 %v694, 4294901760
        %v696 = vsub.f32 %v694, %v695
        %v697 = vand.u32 %v696, 4294901760
        %698 = vmatpush1.msra.mxu0 %v697
        %699 = vmatprep.subr.mxu0 0.0
        %v700 = vand.u32 %v562, 4294901760
        %v701 = vsub.f32 %v562, %v700
        %v702 = vand.u32 %v701, 4294901760
        %v703 = vsub.f32 %v701, %v702
        %v704 = vand.u32 %v703, 4294901760
        %705 = vmatpush1.msra.mxu0 %v704
        %706 = vmatprep.subr.mxu0 0.0
        %v707 = vand.u32 %v563, 4294901760
        %v708 = vsub.f32 %v563, %v707
        %v709 = vand.u32 %v708, 4294901760
        %v710 = vsub.f32 %v708, %v709
        %v711 = vand.u32 %v710, 4294901760
        %712 = vmatpush1.msra.mxu0 %v711
        %713 = vmatprep.subr.mxu0 0.0
        %v714 = vand.u32 %v564, 4294901760
        %v715 = vsub.f32 %v564, %v714
        %v716 = vand.u32 %v715, 4294901760
        %v717 = vsub.f32 %v715, %v716
        %v718 = vand.u32 %v717, 4294901760
        %719 = vmatpush1.msra.mxu0 %v718
        %720 = vmatprep.subr.mxu0 0.0
        %721 = vmatpush1.msra.mxu0 0.0
        %722 = vmatprep.subr.mxu0 0.0
        %723 = vmatpush1.msra.mxu0 0.0
        %724 = vmatprep.subr.mxu0 0.0
        %725 = vmatpush1.msra.mxu0 0.0
        %726 = vmatprep.subr.mxu0 0.0
        %727 = vmatpush1.msra.mxu0 0.0
        %728 = vmatprep.subr.mxu0 0.0
        %729 = vmatpush1.msra.mxu0 0.0
        %730 = vmatprep.subr.mxu0 0.0
        %731 = vmatpush1.msra.mxu0 0.0
        %732 = vmatprep.subr.mxu0 0.0
        %733 = vmatpush1.msra.mxu0 0.0
        %734 = vmatprep.subr.mxu0 0.0
        %735 = vmatpush1.msra.mxu0 0.0
        %736 = vmatprep.subr.mxu0 0.0
        %737 = vmatpush1.msra.mxu0 0.0
        %738 = vmatprep.subr.mxu0 0.0
        %739 = vmatpush1.msra.mxu0 0.0
        %740 = vmatprep.subr.mxu0 0.0
        %741 = vmatpush1.msra.mxu0 0.0
        %742 = vmatprep.subr.mxu0 0.0
        %743 = vmatpush1.msra.mxu0 0.0
        %744 = vmatprep.subr.mxu0 0.0
        %745 = vmatpush1.msra.mxu0 0.0
        %746 = vmatprep.subr.mxu0 0.0
        %747 = vmatpush1.msra.mxu0 0.0
        %748 = vmatprep.subr.mxu0 0.0
        %749 = vmatpush1.msra.mxu0 0.0
        %750 = vmatprep.subr.mxu0 0.0
        %751 = vmatpush1.msra.mxu0 0.0
        %752 = vmatprep.subr.mxu0 0.0
        %753 = vmatpush1.msra.mxu0 0.0
        %754 = vmatprep.subr.mxu0 0.0
        %755 = vmatpush1.msra.mxu0 0.0
        %756 = vmatprep.subr.mxu0 0.0
        %757 = vmatpush1.msra.mxu0 0.0
        %758 = vmatprep.subr.mxu0 0.0
        %759 = vmatpush1.msra.mxu0 0.0
        %760 = vmatprep.subr.mxu0 0.0
        %761 = vmatpush1.msra.mxu0 0.0
        %762 = vmatprep.subr.mxu0 0.0
        %763 = vmatpush1.msra.mxu0 0.0
        %764 = vmatprep.subr.mxu0 0.0
        %765 = vmatpush1.msra.mxu0 0.0
        %766 = vmatprep.subr.mxu0 0.0
        %767 = vmatpush1.msra.mxu0 0.0
        %768 = vmatprep.mubr.f32.mxu0 0.0
        %v769 = vand.u32 %v566, 4294901760
        %770 = vmatmul.mubr.f32.gmra.mrb[0].mxu0 %v769
        %v771 = vpop.f32.mrb[0].mxu0
        %v772 = vadd.f32 %v651, %v771
        %v773 = vpop.f32.mrb[0].mxu0
        %774 = vmatprep.mubr.f32.mxu0 0.0
        %v775 = vand.u32 %v569, 4294901760
        %776 = vmatmul.mubr.f32.gmra.mrb[0].mxu0 %v775
        %v777 = vpop.f32.mrb[0].mxu0
        %v778 = vadd.f32 %v661, %v777
        %v779 = vpop.f32.mrb[0].mxu0
        %780 = vdwg.mxu0
        %781 = vmatprep.subr.mxu0 0.0
        %v782 = vand.u32 %v557, 4294901760
        %v783 = vsub.f32 %v557, %v782
        %784 = vmatpush1.msra.mxu0 %v783
        %785 = vmatprep.subr.mxu0 0.0
        %v786 = vand.u32 %v558, 4294901760
        %v787 = vsub.f32 %v558, %v786
        %788 = vmatpush1.msra.mxu0 %v787
        %789 = vmatprep.subr.mxu0 0.0
        %v790 = vand.u32 %v559, 4294901760
        %v791 = vsub.f32 %v559, %v790
        %792 = vmatpush1.msra.mxu0 %v791
        %793 = vmatprep.subr.mxu0 0.0
        %v794 = vand.u32 %v560, 4294901760
        %v795 = vsub.f32 %v560, %v794
        %796 = vmatpush1.msra.mxu0 %v795
        %797 = vmatprep.subr.mxu0 0.0
        %v798 = vand.u32 %v561, 4294901760
        %v799 = vsub.f32 %v561, %v798
        %800 = vmatpush1.msra.mxu0 %v799
        %801 = vmatprep.subr.mxu0 0.0
        %v802 = vand.u32 %v562, 4294901760
        %v803 = vsub.f32 %v562, %v802
        %804 = vmatpush1.msra.mxu0 %v803
        %805 = vmatprep.subr.mxu0 0.0
        %v806 = vand.u32 %v563, 4294901760
        %v807 = vsub.f32 %v563, %v806
        %808 = vmatpush1.msra.mxu0 %v807
        %809 = vmatprep.subr.mxu0 0.0
        %v810 = vand.u32 %v564, 4294901760
        %v811 = vsub.f32 %v564, %v810
        %812 = vmatpush1.msra.mxu0 %v811
        %813 = vmatprep.subr.mxu0 0.0
        %814 = vmatpush1.msra.mxu0 0.0
        %815 = vmatprep.subr.mxu0 0.0
        %816 = vmatpush1.msra.mxu0 0.0
        %817 = vmatprep.subr.mxu0 0.0
        %818 = vmatpush1.msra.mxu0 0.0
        %819 = vmatprep.subr.mxu0 0.0
        %820 = vmatpush1.msra.mxu0 0.0
        %821 = vmatprep.subr.mxu0 0.0
        %822 = vmatpush1.msra.mxu0 0.0
        %823 = vmatprep.subr.mxu0 0.0
        %824 = vmatpush1.msra.mxu0 0.0
        %825 = vmatprep.subr.mxu0 0.0
        %826 = vmatpush1.msra.mxu0 0.0
        %827 = vmatprep.subr.mxu0 0.0
        %828 = vmatpush1.msra.mxu0 0.0
        %829 = vmatprep.subr.mxu0 0.0
        %830 = vmatpush1.msra.mxu0 0.0
        %831 = vmatprep.subr.mxu0 0.0
        %832 = vmatpush1.msra.mxu0 0.0
        %833 = vmatprep.subr.mxu0 0.0
        %834 = vmatpush1.msra.mxu0 0.0
        %835 = vmatprep.subr.mxu0 0.0
        %836 = vmatpush1.msra.mxu0 0.0
        %837 = vmatprep.subr.mxu0 0.0
        %838 = vmatpush1.msra.mxu0 0.0
        %839 = vmatprep.subr.mxu0 0.0
        %840 = vmatpush1.msra.mxu0 0.0
        %841 = vmatprep.subr.mxu0 0.0
        %842 = vmatpush1.msra.mxu0 0.0
        %843 = vmatprep.subr.mxu0 0.0
        %844 = vmatpush1.msra.mxu0 0.0
        %845 = vmatprep.subr.mxu0 0.0
        %846 = vmatpush1.msra.mxu0 0.0
        %847 = vmatprep.subr.mxu0 0.0
        %848 = vmatpush1.msra.mxu0 0.0
        %849 = vmatprep.subr.mxu0 0.0
        %850 = vmatpush1.msra.mxu0 0.0
        %851 = vmatprep.subr.mxu0 0.0
        %852 = vmatpush1.msra.mxu0 0.0
        %853 = vmatprep.subr.mxu0 0.0
        %854 = vmatpush1.msra.mxu0 0.0
        %855 = vmatprep.subr.mxu0 0.0
        %856 = vmatpush1.msra.mxu0 0.0
        %857 = vmatprep.subr.mxu0 0.0
        %858 = vmatpush1.msra.mxu0 0.0
        %859 = vmatprep.subr.mxu0 0.0
        %860 = vmatpush1.msra.mxu0 0.0
        %861 = vmatprep.mubr.f32.mxu0 0.0
        %v862 = vand.u32 %v566, 4294901760
        %v863 = vsub.f32 %v566, %v862
        %864 = vmatmul.mubr.f32.gmra.mrb[0].mxu0 %v863
        %v865 = vpop.f32.mrb[0].mxu0
        %v866 = vadd.f32 %v772, %v865
        %v867 = vpop.f32.mrb[0].mxu0
        %868 = vmatprep.mubr.f32.mxu0 0.0
        %v869 = vand.u32 %v569, 4294901760
        %v870 = vsub.f32 %v569, %v869
        %871 = vmatmul.mubr.f32.gmra.mrb[0].mxu0 %v870
        %v872 = vpop.f32.mrb[0].mxu0
        %v873 = vadd.f32 %v778, %v872
        %v874 = vpop.f32.mrb[0].mxu0
        %875 = vdwg.mxu0
        %876 = vmatprep.subr.mxu0 0.0
        %v877 = vand.u32 %v557, 4294901760
        %878 = vmatpush1.msra.mxu0 %v877
        %879 = vmatprep.subr.mxu0 0.0
        %v880 = vand.u32 %v558, 4294901760
        %881 = vmatpush1.msra.mxu0 %v880
        %882 = vmatprep.subr.mxu0 0.0
        %v883 = vand.u32 %v559, 4294901760
        %884 = vmatpush1.msra.mxu0 %v883
        %885 = vmatprep.subr.mxu0 0.0
        %v886 = vand.u32 %v560, 4294901760
        %887 = vmatpush1.msra.mxu0 %v886
        %888 = vmatprep.subr.mxu0 0.0
        %v889 = vand.u32 %v561, 4294901760
        %890 = vmatpush1.msra.mxu0 %v889
        %891 = vmatprep.subr.mxu0 0.0
        %v892 = vand.u32 %v562, 4294901760
        %893 = vmatpush1.msra.mxu0 %v892
        %894 = vmatprep.subr.mxu0 0.0
        %v895 = vand.u32 %v563, 4294901760
        %896 = vmatpush1.msra.mxu0 %v895
        %897 = vmatprep.subr.mxu0 0.0
        %v898 = vand.u32 %v564, 4294901760
        %899 = vmatpush1.msra.mxu0 %v898
        %900 = vmatprep.subr.mxu0 0.0
        %901 = vmatpush1.msra.mxu0 0.0
        %902 = vmatprep.subr.mxu0 0.0
        %903 = vmatpush1.msra.mxu0 0.0
        %904 = vmatprep.subr.mxu0 0.0
        %905 = vmatpush1.msra.mxu0 0.0
        %906 = vmatprep.subr.mxu0 0.0
        %907 = vmatpush1.msra.mxu0 0.0
        %908 = vmatprep.subr.mxu0 0.0
        %909 = vmatpush1.msra.mxu0 0.0
        %910 = vmatprep.subr.mxu0 0.0
        %911 = vmatpush1.msra.mxu0 0.0
        %912 = vmatprep.subr.mxu0 0.0
        %913 = vmatpush1.msra.mxu0 0.0
        %914 = vmatprep.subr.mxu0 0.0
        %915 = vmatpush1.msra.mxu0 0.0
        %916 = vmatprep.subr.mxu0 0.0
        %917 = vmatpush1.msra.mxu0 0.0
        %918 = vmatprep.subr.mxu0 0.0
        %919 = vmatpush1.msra.mxu0 0.0
        %920 = vmatprep.subr.mxu0 0.0
        %921 = vmatpush1.msra.mxu0 0.0
        %922 = vmatprep.subr.mxu0 0.0
        %923 = vmatpush1.msra.mxu0 0.0
        %924 = vmatprep.subr.mxu0 0.0
        %925 = vmatpush1.msra.mxu0 0.0
        %926 = vmatprep.subr.mxu0 0.0
        %927 = vmatpush1.msra.mxu0 0.0
        %928 = vmatprep.subr.mxu0 0.0
        %929 = vmatpush1.msra.mxu0 0.0
        %930 = vmatprep.subr.mxu0 0.0
        %931 = vmatpush1.msra.mxu0 0.0
        %932 = vmatprep.subr.mxu0 0.0
        %933 = vmatpush1.msra.mxu0 0.0
        %934 = vmatprep.subr.mxu0 0.0
        %935 = vmatpush1.msra.mxu0 0.0
        %936 = vmatprep.subr.mxu0 0.0
        %937 = vmatpush1.msra.mxu0 0.0
        %938 = vmatprep.subr.mxu0 0.0
        %939 = vmatpush1.msra.mxu0 0.0
        %940 = vmatprep.subr.mxu0 0.0
        %941 = vmatpush1.msra.mxu0 0.0
        %942 = vmatprep.subr.mxu0 0.0
        %943 = vmatpush1.msra.mxu0 0.0
        %944 = vmatprep.subr.mxu0 0.0
        %945 = vmatpush1.msra.mxu0 0.0
        %946 = vmatprep.subr.mxu0 0.0
        %947 = vmatpush1.msra.mxu0 0.0
        %948 = vmatprep.mubr.f32.mxu0 0.0
        %v949 = vand.u32 %v566, 4294901760
        %v950 = vsub.f32 %v566, %v949
        %v951 = vand.u32 %v950, 4294901760
        %952 = vmatmul.mubr.f32.gmra.mrb[0].mxu0 %v951
        %v953 = vpop.f32.mrb[0].mxu0
        %v954 = vadd.f32 %v866, %v953
        %v955 = vpop.f32.mrb[0].mxu0
        %956 = vmatprep.mubr.f32.mxu0 0.0
        %v957 = vand.u32 %v569, 4294901760
        %v958 = vsub.f32 %v569, %v957
        %v959 = vand.u32 %v958, 4294901760
        %960 = vmatmul.mubr.f32.gmra.mrb[0].mxu0 %v959
        %v961 = vpop.f32.mrb[0].mxu0
        %v962 = vadd.f32 %v873, %v961
        %v963 = vpop.f32.mrb[0].mxu0
        %964 = vdwg.mxu0
        %965 = vmatprep.subr.mxu0 0.0
        %v966 = vand.u32 %v557, 4294901760
        %v967 = vsub.f32 %v557, %v966
        %v968 = vand.u32 %v967, 4294901760
        %969 = vmatpush1.msra.mxu0 %v968
        %970 = vmatprep.subr.mxu0 0.0
        %v971 = vand.u32 %v558, 4294901760
        %v972 = vsub.f32 %v558, %v971
        %v973 = vand.u32 %v972, 4294901760
        %974 = vmatpush1.msra.mxu0 %v973
        %975 = vmatprep.subr.mxu0 0.0
        %v976 = vand.u32 %v559, 4294901760
        %v977 = vsub.f32 %v559, %v976
        %v978 = vand.u32 %v977, 4294901760
        %979 = vmatpush1.msra.mxu0 %v978
        %980 = vmatprep.subr.mxu0 0.0
        %v981 = vand.u32 %v560, 4294901760
        %v982 = vsub.f32 %v560, %v981
        %v983 = vand.u32 %v982, 4294901760
        %984 = vmatpush1.msra.mxu0 %v983
        %985 = vmatprep.subr.mxu0 0.0
        %v986 = vand.u32 %v561, 4294901760
        %v987 = vsub.f32 %v561, %v986
        %v988 = vand.u32 %v987, 4294901760
        %989 = vmatpush1.msra.mxu0 %v988
        %990 = vmatprep.subr.mxu0 0.0
        %v991 = vand.u32 %v562, 4294901760
        %v992 = vsub.f32 %v562, %v991
        %v993 = vand.u32 %v992, 4294901760
        %994 = vmatpush1.msra.mxu0 %v993
        %995 = vmatprep.subr.mxu0 0.0
        %v996 = vand.u32 %v563, 4294901760
        %v997 = vsub.f32 %v563, %v996
        %v998 = vand.u32 %v997, 4294901760
        %999 = vmatpush1.msra.mxu0 %v998
        %1000 = vmatprep.subr.mxu0 0.0
        %v1001 = vand.u32 %v564, 4294901760
        %v1002 = vsub.f32 %v564, %v1001
        %v1003 = vand.u32 %v1002, 4294901760
        %1004 = vmatpush1.msra.mxu0 %v1003
        %1005 = vmatprep.subr.mxu0 0.0
        %1006 = vmatpush1.msra.mxu0 0.0
        %1007 = vmatprep.subr.mxu0 0.0
        %1008 = vmatpush1.msra.mxu0 0.0
        %1009 = vmatprep.subr.mxu0 0.0
        %1010 = vmatpush1.msra.mxu0 0.0
        %1011 = vmatprep.subr.mxu0 0.0
        %1012 = vmatpush1.msra.mxu0 0.0
        %1013 = vmatprep.subr.mxu0 0.0
        %1014 = vmatpush1.msra.mxu0 0.0
        %1015 = vmatprep.subr.mxu0 0.0
        %1016 = vmatpush1.msra.mxu0 0.0
        %1017 = vmatprep.subr.mxu0 0.0
        %1018 = vmatpush1.msra.mxu0 0.0
        %1019 = vmatprep.subr.mxu0 0.0
        %1020 = vmatpush1.msra.mxu0 0.0
        %1021 = vmatprep.subr.mxu0 0.0
        %1022 = vmatpush1.msra.mxu0 0.0
        %1023 = vmatprep.subr.mxu0 0.0
        %1024 = vmatpush1.msra.mxu0 0.0
        %1025 = vmatprep.subr.mxu0 0.0
        %1026 = vmatpush1.msra.mxu0 0.0
        %1027 = vmatprep.subr.mxu0 0.0
        %1028 = vmatpush1.msra.mxu0 0.0
        %1029 = vmatprep.subr.mxu0 0.0
        %1030 = vmatpush1.msra.mxu0 0.0
        %1031 = vmatprep.subr.mxu0 0.0
        %1032 = vmatpush1.msra.mxu0 0.0
        %1033 = vmatprep.subr.mxu0 0.0
        %1034 = vmatpush1.msra.mxu0 0.0
        %1035 = vmatprep.subr.mxu0 0.0
        %1036 = vmatpush1.msra.mxu0 0.0
        %1037 = vmatprep.subr.mxu0 0.0
        %1038 = vmatpush1.msra.mxu0 0.0
        %1039 = vmatprep.subr.mxu0 0.0
        %1040 = vmatpush1.msra.mxu0 0.0
        %1041 = vmatprep.subr.mxu0 0.0
        %1042 = vmatpush1.msra.mxu0 0.0
        %1043 = vmatprep.subr.mxu0 0.0
        %1044 = vmatpush1.msra.mxu0 0.0
        %1045 = vmatprep.subr.mxu0 0.0
        %1046 = vmatpush1.msra.mxu0 0.0
        %1047 = vmatprep.subr.mxu0 0.0
        %1048 = vmatpush1.msra.mxu0 0.0
        %1049 = vmatprep.subr.mxu0 0.0
        %1050 = vmatpush1.msra.mxu0 0.0
        %1051 = vmatprep.subr.mxu0 0.0
        %1052 = vmatpush1.msra.mxu0 0.0
        %1053 = vmatprep.mubr.f32.mxu0 0.0
        %v1054 = vand.u32 %v566, 4294901760
        %1055 = vmatmul.mubr.f32.gmra.mrb[0].mxu0 %v1054
        %v1056 = vpop.f32.mrb[0].mxu0
        %v1057 = vadd.f32 %v954, %v1056
        %v1058 = vpop.f32.mrb[0].mxu0
        %1059 = vmatprep.mubr.f32.mxu0 0.0
        %v1060 = vand.u32 %v569, 4294901760
        %1061 = vmatmul.mubr.f32.gmra.mrb[0].mxu0 %v1060
        %v1062 = vpop.f32.mrb[0].mxu0
        %v1063 = vadd.f32 %v962, %v1062
        %v1064 = vpop.f32.mrb[0].mxu0
        %1065 = vdwg.mxu0
        %1066 = vmatprep.subr.mxu0 0.0
        %v1067 = vand.u32 %v557, 4294901760
        %1068 = vmatpush1.msra.mxu0 %v1067
        %1069 = vmatprep.subr.mxu0 0.0
        %v1070 = vand.u32 %v558, 4294901760
        %1071 = vmatpush1.msra.mxu0 %v1070
        %1072 = vmatprep.subr.mxu0 0.0
        %v1073 = vand.u32 %v559, 4294901760
        %1074 = vmatpush1.msra.mxu0 %v1073
        %1075 = vmatprep.subr.mxu0 0.0
        %v1076 = vand.u32 %v560, 4294901760
        %1077 = vmatpush1.msra.mxu0 %v1076
        %1078 = vmatprep.subr.mxu0 0.0
        %v1079 = vand.u32 %v561, 4294901760
        %1080 = vmatpush1.msra.mxu0 %v1079
        %1081 = vmatprep.subr.mxu0 0.0
        %v1082 = vand.u32 %v562, 4294901760
        %1083 = vmatpush1.msra.mxu0 %v1082
        %1084 = vmatprep.subr.mxu0 0.0
        %v1085 = vand.u32 %v563, 4294901760
        %1086 = vmatpush1.msra.mxu0 %v1085
        %1087 = vmatprep.subr.mxu0 0.0
        %v1088 = vand.u32 %v564, 4294901760
        %1089 = vmatpush1.msra.mxu0 %v1088
        %1090 = vmatprep.subr.mxu0 0.0
        %1091 = vmatpush1.msra.mxu0 0.0
        %1092 = vmatprep.subr.mxu0 0.0
        %1093 = vmatpush1.msra.mxu0 0.0
        %1094 = vmatprep.subr.mxu0 0.0
        %1095 = vmatpush1.msra.mxu0 0.0
        %1096 = vmatprep.subr.mxu0 0.0
        %1097 = vmatpush1.msra.mxu0 0.0
        %1098 = vmatprep.subr.mxu0 0.0
        %1099 = vmatpush1.msra.mxu0 0.0
        %1100 = vmatprep.subr.mxu0 0.0
        %1101 = vmatpush1.msra.mxu0 0.0
        %1102 = vmatprep.subr.mxu0 0.0
        %1103 = vmatpush1.msra.mxu0 0.0
        %1104 = vmatprep.subr.mxu0 0.0
        %1105 = vmatpush1.msra.mxu0 0.0
        %1106 = vmatprep.subr.mxu0 0.0
        %1107 = vmatpush1.msra.mxu0 0.0
        %1108 = vmatprep.subr.mxu0 0.0
        %1109 = vmatpush1.msra.mxu0 0.0
        %1110 = vmatprep.subr.mxu0 0.0
        %1111 = vmatpush1.msra.mxu0 0.0
        %1112 = vmatprep.subr.mxu0 0.0
        %1113 = vmatpush1.msra.mxu0 0.0
        %1114 = vmatprep.subr.mxu0 0.0
        %1115 = vmatpush1.msra.mxu0 0.0
        %1116 = vmatprep.subr.mxu0 0.0
        %1117 = vmatpush1.msra.mxu0 0.0
        %1118 = vmatprep.subr.mxu0 0.0
        %1119 = vmatpush1.msra.mxu0 0.0
        %1120 = vmatprep.subr.mxu0 0.0
        %1121 = vmatpush1.msra.mxu0 0.0
        %1122 = vmatprep.subr.mxu0 0.0
        %1123 = vmatpush1.msra.mxu0 0.0
        %1124 = vmatprep.subr.mxu0 0.0
        %1125 = vmatpush1.msra.mxu0 0.0
        %1126 = vmatprep.subr.mxu0 0.0
        %1127 = vmatpush1.msra.mxu0 0.0
        %1128 = vmatprep.subr.mxu0 0.0
        %1129 = vmatpush1.msra.mxu0 0.0
        %1130 = vmatprep.subr.mxu0 0.0
        %1131 = vmatpush1.msra.mxu0 0.0
        %1132 = vmatprep.subr.mxu0 0.0
        %1133 = vmatpush1.msra.mxu0 0.0
        %1134 = vmatprep.subr.mxu0 0.0
        %1135 = vmatpush1.msra.mxu0 0.0
        %1136 = vmatprep.subr.mxu0 0.0
        %1137 = vmatpush1.msra.mxu0 0.0
        %1138 = vmatprep.mubr.f32.mxu0 0.0
        %v1139 = vand.u32 %v566, 4294901760
        %1140 = vmatmul.mubr.f32.gmra.mrb[0].mxu0 %v1139
        %v1141 = vpop.f32.mrb[0].mxu0
        %v1142 = vadd.f32 %v1057, %v1141
        %v1143 = vpop.f32.mrb[0].mxu0
        %1144 = vmatprep.mubr.f32.mxu0 0.0
        %v1145 = vand.u32 %v569, 4294901760
        %1146 = vmatmul.mubr.f32.gmra.mrb[0].mxu0 %v1145
        %v1147 = vpop.f32.mrb[0].mxu0
        %v1148 = vadd.f32 %v1063, %v1147
        %v1149 = vpop.f32.mrb[0].mxu0
        %1150 = vdwg.mxu0
        %v1151 = vmax.f32 %v1142, 0.0
        %v1152 = vmax.f32 %v1148, 0.0
        %v1153 = vrot.slane %v1151, 6
        %v1154 = vrot.slane %v1152, 6
        %vm1155 = vcmp.lt.s32.totalorder %v466, 2
        %v1156 = vsel %vm1155, %v1153, %v1154
        %v1157 = vsel %vm1155, %v1154, %v1153
        %vm1158 = vcmp.ge.s32.totalorder %v466, 2
        %vm1159 = vcmp.ge.s32.totalorder %v467, 2
        %v1160 = vsel %vm1158, %v1157, 0.0
        %v1161 = vsel %vm1159, %v1156, 0.0
        %v1162 = vld [vmem:[#allocation7] sm:$0x1]
        %v1163 = vlaneseq
        %v1164 = vshrl.u32 %v1163, 7
        %v1165 = vsub.s32 0, %v1164
        %v1166 = vrot.slane %v1162, %v1165
        %v1167 = vmul.f32 %v1160, %v1166
        %v1168 = vmul.f32 %v1161, %v1166
        %v1169 = vrot.slane %v1151, 7
        %v1170 = vrot.slane %v1152, 7
        %v1171 = vsel %vm516, %v1169, %v1170
        %v1172 = vsel %vm516, %v1170, %v1169
        %v1173 = vsel %vm519, %v1172, 0.0
        %v1174 = vsel %vm520, %v1171, 0.0
        %v1175 = vld [vmem:[#allocation7 + $0x1] sm:$0x1]
        %v1176 = vlaneseq
        %v1177 = vshrl.u32 %v1176, 7
        %v1178 = vsub.s32 0, %v1177
        %v1179 = vrot.slane %v1175, %v1178
        %v1180 = vmul.f32 %v1173, %v1179
        %v1181 = vmul.f32 %v1174, %v1179
        %v1182 = vadd.f32 %v1167, %v1180
        %v1183 = vadd.f32 %v1168, %v1181
        %v1184 = vld [vmem:[#allocation7 + $0x2] sm:$0x1]
        %v1185 = vlaneseq
        %v1186 = vshrl.u32 %v1185, 7
        %v1187 = vsub.s32 0, %v1186
        %v1188 = vrot.slane %v1184, %v1187
        %v1189 = vmul.f32 %v1151, %v1188
        %v1190 = vmul.f32 %v1152, %v1188
        %v1191 = vadd.f32 %v1182, %v1189
        %v1192 = vadd.f32 %v1183, %v1190
        %v1193 = vrot.slane %v1151, 1
        %v1194 = vrot.slane %v1152, 1
        %v1195 = vsel %vm541, %v1193, %v1194
        %v1196 = vsel %vm541, %v1194, %v1193
        %v1197 = vsel %vm544, %v1195, 0.0
        %v1198 = vsel %vm545, %v1196, 0.0
        %v1199 = vld [vmem:[#allocation7 + $0x3] sm:$0x1]
        %v1200 = vlaneseq
        %v1201 = vshrl.u32 %v1200, 7
        %v1202 = vsub.s32 0, %v1201
        %v1203 = vrot.slane %v1199, %v1202
        %v1204 = vmul.f32 %v1197, %v1203
        %v1205 = vmul.f32 %v1198, %v1203
        %v1206 = vadd.f32 %v1191, %v1204
        %v1207 = vadd.f32 %v1192, %v1205
        %v1208 = vrot.slane %v1151, 2
        %v1209 = vrot.slane %v1152, 2
        %vm1210 = vcmp.lt.s32.totalorder %v466, 6
        %v1211 = vsel %vm1210, %v1208, %v1209
        %v1212 = vsel %vm1210, %v1209, %v1208
        %vm1213 = vcmp.lt.s32.totalorder %v466, 14
        %vm1214 = vcmp.lt.s32.totalorder %v467, 14
        %v1215 = vsel %vm1213, %v1211, 0.0
        %v1216 = vsel %vm1214, %v1212, 0.0
        %v1217 = vld [vmem:[#allocation7 + $0x4] sm:$0x1]
        %v1218 = vlaneseq
        %v1219 = vshrl.u32 %v1218, 7
        %v1220 = vsub.s32 0, %v1219
        %v1221 = vrot.slane %v1217, %v1220
        %v1222 = vmul.f32 %v1215, %v1221
        %v1223 = vmul.f32 %v1216, %v1221
        %v1224 = vadd.f32 %v1206, %v1222
        %v1225 = vadd.f32 %v1207, %v1223
        %v1226 = vrot.slane %v1224, 7
        %v1227 = vrot.slane %v1225, 7
        %v1228 = vsel %vm516, %v1226, %v1227
        %v1229 = vsel %vm516, %v1227, %v1226
        %v1230 = vsel %vm519, %v1229, 0.0
        %v1231 = vsel %vm520, %v1228, 0.0
        %v1232 = vld [vmem:[#allocation8] sm:$0x1]
        %v1233 = vlaneseq
        %v1234 = vshrl.u32 %v1233, 7
        %v1235 = vsub.s32 0, %v1234
        %v1236 = vrot.slane %v1232, %v1235
        %v1237 = vmul.f32 %v1230, %v1236
        %v1238 = vmul.f32 %v1231, %v1236
        %v1239 = vld [vmem:[#allocation8 + $0x1] sm:$0x1]
        %v1240 = vlaneseq
        %v1241 = vshrl.u32 %v1240, 7
        %v1242 = vsub.s32 0, %v1241
        %v1243 = vrot.slane %v1239, %v1242
        %v1244 = vmul.f32 %v1224, %v1243
        %v1245 = vmul.f32 %v1225, %v1243
        %v1246 = vadd.f32 %v1237, %v1244
        %v1247 = vadd.f32 %v1238, %v1245
        %v1248 = vrot.slane %v1224, 1
        %v1249 = vrot.slane %v1225, 1
        %v1250 = vsel %vm541, %v1248, %v1249
        %v1251 = vsel %vm541, %v1249, %v1248
        %v1252 = vsel %vm544, %v1250, 0.0
        %v1253 = vsel %vm545, %v1251, 0.0
        %v1254 = vld [vmem:[#allocation8 + $0x2] sm:$0x1]
        %v1255 = vlaneseq
        %v1256 = vshrl.u32 %v1255, 7
        %v1257 = vsub.s32 0, %v1256
        %v1258 = vrot.slane %v1254, %v1257
        %v1259 = vmul.f32 %v1252, %v1258
        %v1260 = vmul.f32 %v1253, %v1258
        %v1261 = vadd.f32 %v1246, %v1259
        %v1262 = vadd.f32 %v1247, %v1260
        %v1263 = vsel %vm468, %v1261, 0.0
        %v1264 = vsel %vm468, %v1262, 0.0
        %v1265 = vadd.f32 %v1263, %v1264
        %v1266 = vrot.slane %v1265, 4
        %v1267 = vadd.f32 %v1265, %v1266
        %v1268 = vrot.slane %v1267, 2
        %v1269 = vadd.f32 %v1267, %v1268
        %v1270 = vrot.slane %v1269, 1
        %v1271 = vadd.f32 %v1269, %v1270
        %v1272 = vrcp.pop 16.0
        %v1273 = vmul.f32 %v1271, %v1272
        %v1274 = vld [vmem:[#allocation10] sm:$0xf]
        %v1275 = vmul.f32 %v1273, %v1274
        %vm1276 = vcmask 519168
        %v1277 = vsel %vm1276, %v1275, 0.0
        %1278 = vadd.xlane.f32.xlu0 %v1277
        %v1279 = vpop.xlane.xlu0 %1278
        %v1280 = vmax.f32 %v1279, 0.0
        %v1281 = vld [vmem:[#allocation11] sm:$0xf]
        %v1282 = vmul.f32 %v1280, %v1281
        %v1283 = vsel %vm1276, %v1282, 0.0
        %v1284 = vrot.slane %v1283, 4
        %v1285 = vadd.f32 %v1283, %v1284
        %v1286 = vrot.slane %v1285, 2
        %v1287 = vadd.f32 %v1285, %v1286
        %v1288 = vrot.slane %v1287, 1
        %v1289 = vadd.f32 %v1287, %v1288
        %v1290 = vxor.u32 %v1289, 2147483648
        %v1291 = vmul.f32 %v1290, 1.442695
        %v1292 = vpow.pop %v1291
        %v1293 = vadd.f32 %v1292, 1.0
        %v1294 = vrcp.pop %v1293
        %v1295 = vmul.f32 1.0, %v1294
        %v1296 = vmul.f32 %v1261, %v1295
        %v1297 = vmul.f32 %v1262, %v1295
        %v1298 = vadd.f32 %v463, %v1296
        %v1299 = vadd.f32 %v464, %v1297
        %1300 = vst.msk [vmem:[%s455] sm:$0xff] %vm468, %v1298
        %1301 = vst.msk [vmem:[%s455 + $0x8] sm:$0xff] %vm468, %v1299
        %s1302 = sand.u32 %s258, 1
        %s1303 = scalar_lea.sflag [#allocation4], %s1302
        %s1304 = sand.u32 %s258, 1
        %s1305 = smul.addr %s1304, 16
        %s1306 = scalar_lea.vmem [#allocation13], %s1305
        // Predicated region
        $region85: #{tpu_custom_call.1} parent=59 // pred_check
          %p1307 = pneg %p268
        $region86: #{tpu_custom_call.1} parent=59 // pred_check_branch
          %1309 = sbr.rel (%p1307) target = $region88
        $region87: #{tpu_custom_call.1} parent=59 // pred_region
          %s1311 = ssub.s32 256, 256
          %1312 = vsyncadd %s1303, %s1311
          %s1313 = smul.addr %s30, 2
          %s1314 = smul.addr %s1313, 128
          %s1315 = scalar_lea.hbm %s10, %s1314
          %s1316 = sshll.u32 %s1306, 4
          %s1317 = int_to_ptr.vmem [resolvable:$true] %s1316
          %1322 = dma.vmem_to_hbm [thread:$0]  %s1317, 256, %s1315, %s1303, 128, 128, 8
        $region88: #{tpu_custom_call.1} parent=59 // pred_fallthru
          _
      $region60: #{tpu_custom_call.1} parent=5 // pred_fallthru
        _
      %p1323 = scmp.le.s32.totalorder 2, %s25
      // Predicated region
      $region89: #{tpu_custom_call.1} parent=5 // pred_check
        %p1324 = pneg %p1323
      $region90: #{tpu_custom_call.1} parent=5 // pred_check_branch
        %1326 = sbr.rel (%p1324) target = $region92
      $region91: #{tpu_custom_call.1} parent=5 // pred_region
        %s1327 = ssub.s32 %s25, 2
        // Predicated region
        $region93: #{tpu_custom_call.1} parent=91 // pred_check
          %p1328 = pneg %p274
        $region94: #{tpu_custom_call.1} parent=91 // pred_check_branch
          %1330 = sbr.rel (%p1328) target = $region96
        $region95: #{tpu_custom_call.1} parent=91 // pred_region
          %s1331 = sand.u32 %s259, 1
          %s1332 = scalar_lea.sflag [#allocation4], %s1331
          %s1333 = sand.u32 %s259, 1
          %s1334 = smul.addr %s1333, 16
          %s1335 = scalar_lea.vmem [#allocation13], %s1334
          %1336 = dma.done %s1332, 256
        $region96: #{tpu_custom_call.1} parent=91 // pred_fallthru
          _
      $region92: #{tpu_custom_call.1} parent=5 // pred_fallthru
        _
    $region6: #{tpu_custom_call.1} parent=1 // loop_footer
      %s29 = sadd.s32 1, %s25
    $region7: #{tpu_custom_call.1} parent=1 // loop_footer_branch
      %24 = sbr.rel target = $region3
    $region8: #{tpu_custom_call.1} parent=1 // loop_exit
      _
    %1337 = vsyncpa [#allocation3], 1
    %s1338 = scalar_lea.sflag [#allocation3], 1
    %1339 = vsyncpa %s1338, 1
    %1340 = vsyncpa [#allocation6], 1
    %1341 = vsyncpa [#allocation9], 1
    %1342 = vsyncpa [#allocation12], 1
    %1343 = vsyncpa [#allocation4], 1
    %s1344 = scalar_lea.sflag [#allocation4], 1
    %1345 = vsyncpa %s1344, 1

</llo_original>
